<compile_context>
chip_gen: v6e
topology: v6e:2x2x1
jax: 0.10.0
libtpu: 0.0.40
codegen_flags: <defaults>
</compile_context>

<pallas_src>
import jax
import jax.numpy as jnp
from jax import lax
from jax.experimental import pallas as pl
from jax.experimental.pallas import tpu as pltpu


def node_model_kernel(x_ref, row_ref, col_ref, ea_ref,
                      w1a_ref, w1b_ref, b1_ref,
                      w2a_ref, b2a_ref,
                      w3a_ref, w3b_ref, b3_ref,
                      w4_ref, b4_ref,
                      o_ref,
                      xa_ref, acc_ref, iota_g_ref, iota_s_ref):
    f32 = jnp.float32
    eb = pl.program_id(0)
    n_eb = pl.num_programs(0)

    TE, TN = iota_g_ref.shape                 # edge tile, node tile
    N_pad = acc_ref.shape[0]
    H2 = w2a_ref.shape[1] - 1                 # 2I (last col of w2_aug = count col)
    n_nt = N_pad // TN                        # node tiles (Python int)

    @pl.when(eb == 0)
    def _init():
        # Hoist the x-side of node_mlp_1's first Linear out of the edge loop:
        #   x[row] @ W1a  ==  gather(x @ W1a, row)
        xa_ref[...] = jnp.dot(x_ref[...], w1a_ref[...], preferred_element_type=f32)
        acc_ref[...] = jnp.zeros_like(acc_ref)
        # Block-invariant local-node iotas, cached once (VALU -> vld).
        iota_g_ref[...] = lax.broadcasted_iota(jnp.int32, (TE, TN), 1)
        iota_s_ref[...] = lax.broadcasted_iota(jnp.int32, (TN, TE), 0)

    row = row_ref[...]                        # [TE, 1]  sublane layout (gather)
    col = col_ref[...]                        # [1, TE]  lane layout (scatter)

    # --- per-edge MLP (node_mlp_1), edge-attr half (node-tile independent) ---
    h_e = jnp.dot(ea_ref[...], w1b_ref[...], preferred_element_type=f32) + b1_ref[...]

    # --- gather half: onehot(row) @ (x @ W1a), tiled over node tiles ---
    def gather_body(nt, hx):
        base = pl.multiple_of(nt * TN, TN)
        gth = (iota_g_ref[...] == (row - base)).astype(f32)        # [TE, TN]
        return hx + jnp.dot(gth, xa_ref[pl.ds(base, TN), :],
                            preferred_element_type=f32)
    h_x = lax.fori_loop(0, n_nt, gather_body, jnp.zeros((TE, H2), f32))

    h = jnp.maximum(h_x + h_e, 0.0)
    # augmented second Linear: h_aug = [ h @ W2 + b2 | 1 ]  (count column free)
    h_aug = jnp.dot(h, w2a_ref[...], preferred_element_type=f32) + b2a_ref[...]

    # --- scatter-add (segment sum + count in one MXU pass), node-tiled ---
    def scatter_body(nt, c):
        base = pl.multiple_of(nt * TN, TN)
        seg = (iota_s_ref[...] == (col - base)).astype(f32)        # [TN, TE]
        cur = acc_ref[pl.ds(base, TN), :]
        acc_ref[pl.ds(base, TN), :] = cur + jnp.dot(seg, h_aug,
                                                    preferred_element_type=f32)
        return c
    lax.fori_loop(0, n_nt, scatter_body, 0)

    @pl.when(eb == n_eb - 1)
    def _finalize():
        acc = acc_ref[...]
        summ = acc[:, :H2]                                         # [N_pad, 2I]
        cnt = acc[:, H2:H2 + 1]                                    # [N_pad, 1]
        mean = summ / jnp.maximum(cnt, 1.0)                        # empty segs -> 0
        # --- node_mlp_2 on nodes ---
        g = (jnp.dot(x_ref[...], w3a_ref[...], preferred_element_type=f32)
             + jnp.dot(mean, w3b_ref[...], preferred_element_type=f32)
             + b3_ref[...])
        g = jnp.maximum(g, 0.0)
        o_ref[...] = jnp.dot(g, w4_ref[...], preferred_element_type=f32) + b4_ref[...]


def node_model_forward(x, edge_index, edge_attr, params, *,
                       edge_tile=1024, node_tile=1024):
    """x: [N, Fn] f32, edge_index: [2, E] int, edge_attr: [E, Fe] f32."""
    N, Fn = x.shape
    E, Fe = edge_attr.shape
    H2 = params["w2"].shape[1]                 # 2I

    # Edge tile: multiple of 128 lanes, capped at edge_tile.
    TE = max(128, min(edge_tile, pl.cdiv(E, 128) * 128))
    TE = pl.cdiv(TE, 128) * 128
    E_pad = pl.cdiv(E, TE) * TE
    pad_e = E_pad - E

    # Node tile: multiple of 8 sublanes; indicators are bounded to [TE,TN]/[TN,TE].
    TN = min(node_tile, pl.cdiv(N, 8) * 8)
    TN = pl.cdiv(TN, 8) * 8
    N_pad = pl.cdiv(N, TN) * TN
    pad_n = N_pad - N

    x_p = jnp.pad(x.astype(jnp.float32), ((0, pad_n), (0, 0)))
    # Padded edges point at node N_pad -> outside every node tile -> contribute nothing.
    row = jnp.pad(edge_index[0].astype(jnp.int32), (0, pad_e), constant_values=N_pad)
    col = jnp.pad(edge_index[1].astype(jnp.int32), (0, pad_e), constant_values=N_pad)
    ea = jnp.pad(edge_attr.astype(jnp.float32), ((0, pad_e), (0, 0)))

    row2d = row.reshape(E_pad, 1)              # sublane layout for [TE, TN] one-hot
    col2d = col.reshape(1, E_pad)              # lane layout for [TN, TE] one-hot

    w1, b1, w2, b2, w3, b3, w4, b4 = (params[k] for k in
                                      ("w1", "b1", "w2", "b2", "w3", "b3", "w4", "b4"))
    # Split the first Linear of each MLP to avoid in-kernel concat.
    w1a, w1b = w1[:Fn], w1[Fn:]                # [Fn, 2I], [Fe, 2I]
    w3a, w3b = w3[:Fn], w3[Fn:]                # [Fn, I],  [2I, I]
    # Augment node_mlp_1's second Linear with a constant-1 output column so the
    # segment count comes out of the same scatter matmul as the segment sum.
    w2a = jnp.concatenate([w2, jnp.zeros((w2.shape[0], 1), w2.dtype)], axis=1)
    b2a = jnp.concatenate([b2, jnp.ones((1, 1), b2.dtype)], axis=1)

    n_blocks = E_pad // TE

    def const(shape):
        return pl.BlockSpec(shape, lambda e, _s=len(shape): (0,) * _s)

    grid_spec = pltpu.PrefetchScalarGridSpec(
        num_scalar_prefetch=0,
        grid=(n_blocks,),
        in_specs=[
            const((N_pad, Fn)),                                    # x (resident)
            pl.BlockSpec((TE, 1), lambda e: (e, 0)),               # row (streamed)
            pl.BlockSpec((1, TE), lambda e: (0, e)),               # col (streamed)
            pl.BlockSpec((TE, Fe), lambda e: (e, 0)),              # edge_attr (streamed)
            const(w1a.shape), const(w1b.shape), const(b1.shape),
            const(w2a.shape), const(b2a.shape),
            const(w3a.shape), const(w3b.shape), const(b3.shape),
            const(w4.shape), const(b4.shape),
        ],
        out_specs=pl.BlockSpec((N_pad, Fn), lambda e: (0, 0)),
        scratch_shapes=[
            pltpu.VMEM((N_pad, H2), jnp.float32),                  # x @ W1a (resident)
            pltpu.VMEM((N_pad, H2 + 1), jnp.float32),              # [segment_sum | count]
            pltpu.VMEM((TE, TN), jnp.int32),                       # cached gather iota
            pltpu.VMEM((TN, TE), jnp.int32),                       # cached scatter iota
        ],
    )

    # Advisory cost hint: dominated by the two one-hot matmuls (gather + scatter).
    flops = (4 * E_pad * N_pad * (H2 + 1)
             + 2 * E_pad * (Fe * H2 + H2 * (H2 + 1))
             + 2 * N_pad * ((Fn + H2) * (H2 // 2) + (H2 // 2) * Fn))
    bytes_accessed = 4 * (x_p.size + row.size + col.size + ea.size + N_pad * Fn)
    cost = pl.CostEstimate(flops=int(flops), transcendentals=0,
                           bytes_accessed=int(bytes_accessed))

    out = pl.pallas_call(
        node_model_kernel,
        out_shape=jax.ShapeDtypeStruct((N_pad, Fn), jnp.float32),
        grid_spec=grid_spec,
        compiler_params=pltpu.CompilerParams(
            dimension_semantics=("arbitrary",),                    # edge axis = reduction
            vmem_limit_bytes=48 * 1024 * 1024),                    # < v7x 64 MiB physical
        cost_estimate=cost,
    )(x_p, row2d, col2d, ea,
      w1a, w1b, b1, w2a, b2a, w3a, w3b, b3, w4, b4)
    return out[:N]


def init_params(key, num_node_features, num_edge_features):
    """Deterministic synthetic params. Weights stored as [in, out]; biases [1, out]."""
    I = num_node_features + num_edge_features
    shapes = {
        "w1": (I, 2 * I), "b1": (1, 2 * I),
        "w2": (2 * I, 2 * I), "b2": (1, 2 * I),
        "w3": (num_node_features + 2 * I, I), "b3": (1, I),
        "w4": (I, num_node_features), "b4": (1, num_node_features),
    }
    params = {}
    for name, shape in shapes.items():
        key, sub = jax.random.split(key)
        params[name] = jax.random.normal(sub, shape, jnp.float32) * 0.1
    return params


def node_model_reference(x, edge_index, edge_attr, params):
    """Pure-JAX reference with identical semantics (for verification)."""
    row, col = edge_index[0], edge_index[1]
    N = x.shape[0]
    h = jnp.concatenate([x[row], edge_attr], axis=1)
    h = jnp.maximum(h @ params["w1"] + params["b1"], 0.0)
    h = h @ params["w2"] + params["b2"]
    summ = jax.ops.segment_sum(h, col, num_segments=N)
    cnt = jax.ops.segment_sum(jnp.ones((h.shape[0], 1), jnp.float32), col, num_segments=N)
    mean = summ / jnp.maximum(cnt, 1.0)
    g = jnp.concatenate([x, mean], axis=1)
    g = jnp.maximum(g @ params["w3"] + params["b3"], 0.0)
    return g @ params["w4"] + params["b4"]


if __name__ == "__main__":
    num_node_features = 4
    num_edge_features = 4
    N, E = 8, 16

    key = jax.random.PRNGKey(0)
    k_x, k_ea, k_ei, k_p = jax.random.split(key, 4)

    x = jax.random.normal(k_x, (N, num_node_features), jnp.float32)
    edge_attr = jax.random.normal(k_ea, (E, num_edge_features), jnp.float32)
    edge_index = jax.random.randint(k_ei, (2, E), 0, N, dtype=jnp.int32)
    params = init_params(k_p, num_node_features, num_edge_features)

    out = node_model_forward(x, edge_index, edge_attr, params)
    out = jax.block_until_ready(out)

    ref = node_model_reference(x, edge_index, edge_attr, params)
    assert out.shape == (N, num_node_features)
    assert jnp.allclose(out, ref, atol=1e-5, rtol=1e-5), "mismatch vs reference"

    print("KERNEL_OK")
</pallas_src>

<mosaic_0001>
module attributes {stable_mosaic.version = 11 : i64} {
  func.func @node_model_kernel(%arg0: i32, %arg1: memref<8x4xf32, #tpu.memory_space<vmem>>, %arg2: memref<128x1xi32, #tpu.memory_space<vmem>>, %arg3: memref<1x128xi32, #tpu.memory_space<vmem>>, %arg4: memref<128x4xf32, #tpu.memory_space<vmem>>, %arg5: memref<4x16xf32, #tpu.memory_space<vmem>>, %arg6: memref<4x16xf32, #tpu.memory_space<vmem>>, %arg7: memref<1x16xf32, #tpu.memory_space<vmem>>, %arg8: memref<16x17xf32, #tpu.memory_space<vmem>>, %arg9: memref<1x17xf32, #tpu.memory_space<vmem>>, %arg10: memref<4x8xf32, #tpu.memory_space<vmem>>, %arg11: memref<16x8xf32, #tpu.memory_space<vmem>>, %arg12: memref<1x8xf32, #tpu.memory_space<vmem>>, %arg13: memref<8x4xf32, #tpu.memory_space<vmem>>, %arg14: memref<1x4xf32, #tpu.memory_space<vmem>>, %arg15: memref<8x4xf32, #tpu.memory_space<vmem>>, %arg16: memref<8x16xf32, #tpu.memory_space<vmem>>, %arg17: memref<8x17xf32, #tpu.memory_space<vmem>>, %arg18: memref<128x8xi32, #tpu.memory_space<vmem>>, %arg19: memref<8x128xi32, #tpu.memory_space<vmem>>) attributes {dimension_semantics = [#tpu.dimension_semantics<arbitrary>], iteration_bounds = array<i64: 1>, scalar_prefetch = 0 : i64, scratch_operands = 4 : i64, tpu.core_type = #tpu.core_type<tc>, window_params = [{pipeline_mode = #tpu.pipeline_mode<synchronous>, transform_indices = @transform_0, window_bounds = array<i64: 8, 4>}, {transform_indices = @transform_1, window_bounds = array<i64: 128, 1>}, {transform_indices = @transform_2, window_bounds = array<i64: 1, 128>}, {transform_indices = @transform_3, window_bounds = array<i64: 128, 4>}, {pipeline_mode = #tpu.pipeline_mode<synchronous>, transform_indices = @transform_4, window_bounds = array<i64: 4, 16>}, {pipeline_mode = #tpu.pipeline_mode<synchronous>, transform_indices = @transform_5, window_bounds = array<i64: 4, 16>}, {pipeline_mode = #tpu.pipeline_mode<synchronous>, transform_indices = @transform_6, window_bounds = array<i64: 1, 16>}, {pipeline_mode = #tpu.pipeline_mode<synchronous>, transform_indices = @transform_7, window_bounds = array<i64: 16, 17>}, {pipeline_mode = #tpu.pipeline_mode<synchronous>, transform_indices = @transform_8, window_bounds = array<i64: 1, 17>}, {pipeline_mode = #tpu.pipeline_mode<synchronous>, transform_indices = @transform_9, window_bounds = array<i64: 4, 8>}, {pipeline_mode = #tpu.pipeline_mode<synchronous>, transform_indices = @transform_10, window_bounds = array<i64: 16, 8>}, {pipeline_mode = #tpu.pipeline_mode<synchronous>, transform_indices = @transform_11, window_bounds = array<i64: 1, 8>}, {pipeline_mode = #tpu.pipeline_mode<synchronous>, transform_indices = @transform_12, window_bounds = array<i64: 8, 4>}, {pipeline_mode = #tpu.pipeline_mode<synchronous>, transform_indices = @transform_13, window_bounds = array<i64: 1, 4>}, {pipeline_mode = #tpu.pipeline_mode<synchronous>, transform_indices = @transform_14, window_bounds = array<i64: 8, 4>}]} {
    %c0_i32 = arith.constant 0 : i32
    %0 = arith.cmpi eq, %arg0, %c0_i32 : i32
    %1 = arith.extui %0 : i1 to i32
    %c0_i32_0 = arith.constant 0 : i32
    %2 = arith.cmpi ne, %1, %c0_i32_0 : i32
    scf.if %2 {
      %c0_32 = arith.constant 0 : index
      %c0_33 = arith.constant 0 : index
      %51 = vector.load %arg1[%c0_32, %c0_33] : memref<8x4xf32, #tpu.memory_space<vmem>>, vector<8x4xf32>
      %c0_34 = arith.constant 0 : index
      %c0_35 = arith.constant 0 : index
      %52 = vector.load %arg5[%c0_34, %c0_35] : memref<4x16xf32, #tpu.memory_space<vmem>>, vector<4x16xf32>
      %cst_36 = arith.constant dense<0.000000e+00> : vector<8x16xf32>
      %53 = tpu.matmul %51, %52, %cst_36 {dimension_numbers = #tpu.dot_dimension_numbers<[1], [0], [0], [1], [0, 0, 1, 1], [], []>} : vector<8x4xf32>, vector<4x16xf32>, vector<8x16xf32> -> vector<8x16xf32>
      %c0_37 = arith.constant 0 : index
      %c0_38 = arith.constant 0 : index
      %54 = vector.load %arg16[%c0_37, %c0_38] : memref<8x16xf32, #tpu.memory_space<vmem>>, vector<8x16xf32>
      tpu.vector_store %arg16[%c0_37, %c0_38], %53 {strides = array<i32>} : memref<8x16xf32, #tpu.memory_space<vmem>>, vector<8x16xf32>,
      %cst_39 = arith.constant 0.000000e+00 : f32
      %55 = vector.broadcast %cst_39 : f32 to vector<8x17xf32>
      %c0_40 = arith.constant 0 : index
      %c0_41 = arith.constant 0 : index
      %56 = vector.load %arg17[%c0_40, %c0_41] : memref<8x17xf32, #tpu.memory_space<vmem>>, vector<8x17xf32>
      tpu.vector_store %arg17[%c0_40, %c0_41], %55 {strides = array<i32>} : memref<8x17xf32, #tpu.memory_space<vmem>>, vector<8x17xf32>,
      %57 = tpu.iota {dimensions = array<i32: 1>} : vector<128x8xi32>
      %c0_42 = arith.constant 0 : index
      %c0_43 = arith.constant 0 : index
      %58 = vector.load %arg18[%c0_42, %c0_43] : memref<128x8xi32, #tpu.memory_space<vmem>>, vector<128x8xi32>
      tpu.vector_store %arg18[%c0_42, %c0_43], %57 {strides = array<i32>} : memref<128x8xi32, #tpu.memory_space<vmem>>, vector<128x8xi32>,
      %59 = tpu.iota {dimensions = array<i32: 0>} : vector<8x128xi32>
      %c0_44 = arith.constant 0 : index
      %c0_45 = arith.constant 0 : index
      %60 = vector.load %arg19[%c0_44, %c0_45] : memref<8x128xi32, #tpu.memory_space<vmem>>, vector<8x128xi32>
      tpu.vector_store %arg19[%c0_44, %c0_45], %59 {strides = array<i32>} : memref<8x128xi32, #tpu.memory_space<vmem>>, vector<8x128xi32>,
    } else {
    }
    %c0 = arith.constant 0 : index
    %c0_1 = arith.constant 0 : index
    %3 = vector.load %arg2[%c0, %c0_1] : memref<128x1xi32, #tpu.memory_space<vmem>>, vector<128x1xi32>
    %c0_2 = arith.constant 0 : index
    %c0_3 = arith.constant 0 : index
    %4 = vector.load %arg3[%c0_2, %c0_3] : memref<1x128xi32, #tpu.memory_space<vmem>>, vector<1x128xi32>
    %c0_4 = arith.constant 0 : index
    %c0_5 = arith.constant 0 : index
    %5 = vector.load %arg4[%c0_4, %c0_5] : memref<128x4xf32, #tpu.memory_space<vmem>>, vector<128x4xf32>
    %c0_6 = arith.constant 0 : index
    %c0_7 = arith.constant 0 : index
    %6 = vector.load %arg6[%c0_6, %c0_7] : memref<4x16xf32, #tpu.memory_space<vmem>>, vector<4x16xf32>
    %cst = arith.constant dense<0.000000e+00> : vector<128x16xf32>
    %7 = tpu.matmul %5, %6, %cst {dimension_numbers = #tpu.dot_dimension_numbers<[1], [0], [0], [1], [0, 0, 1, 1], [], []>} : vector<128x4xf32>, vector<4x16xf32>, vector<128x16xf32> -> vector<128x16xf32>
    %c0_8 = arith.constant 0 : index
    %c0_9 = arith.constant 0 : index
    %8 = vector.load %arg7[%c0_8, %c0_9] : memref<1x16xf32, #tpu.memory_space<vmem>>, vector<1x16xf32>
    %9 = vector.broadcast %8 : vector<1x16xf32> to vector<128x16xf32>
    %10 = arith.addf %7, %9 : vector<128x16xf32>
    %cst_10 = arith.constant 0.000000e+00 : f32
    %11 = vector.broadcast %cst_10 : f32 to vector<128x16xf32>
    %c0_i32_11 = arith.constant 0 : i32
    %c8_i32 = arith.constant 8 : i32
    %12 = arith.muli %c0_i32_11, %c8_i32 : i32
    %13 = tpu.assume_multiple %12, 8 : i32
    %c0_12 = arith.constant 0 : index
    %c0_13 = arith.constant 0 : index
    %14 = vector.load %arg18[%c0_12, %c0_13] : memref<128x8xi32, #tpu.memory_space<vmem>>, vector<128x8xi32>
    %15 = vector.broadcast %13 : i32 to vector<128x1xi32>
    %16 = arith.subi %3, %15 : vector<128x1xi32>
    %17 = vector.broadcast %16 : vector<128x1xi32> to vector<128x8xi32>
    %18 = arith.cmpi eq, %14, %17 : vector<128x8xi32>
    %19 = arith.extui %18 : vector<128x8xi1> to vector<128x8xi32>
    %20 = arith.sitofp %19 : vector<128x8xi32> to vector<128x8xf32>
    %21 = arith.index_cast %13 : i32 to index
    %c0_14 = arith.constant 0 : index
    %22 = vector.load %arg16[%21, %c0_14] : memref<8x16xf32, #tpu.memory_space<vmem>>, vector<8x16xf32>
    %cst_15 = arith.constant dense<0.000000e+00> : vector<128x16xf32>
    %23 = tpu.matmul %20, %22, %cst_15 {dimension_numbers = #tpu.dot_dimension_numbers<[1], [0], [0], [1], [0, 0, 1, 1], [], []>} : vector<128x8xf32>, vector<8x16xf32>, vector<128x16xf32> -> vector<128x16xf32>
    %24 = arith.addf %11, %23 : vector<128x16xf32>
    %c1_i32 = arith.constant 1 : i32
    %25 = arith.addf %24, %10 : vector<128x16xf32>
    %cst_16 = arith.constant 0.000000e+00 : f32
    %26 = vector.broadcast %cst_16 : f32 to vector<128x16xf32>
    %27 = arith.maximumf %25, %26 : vector<128x16xf32>
    %c0_17 = arith.constant 0 : index
    %c0_18 = arith.constant 0 : index
    %28 = vector.load %arg8[%c0_17, %c0_18] : memref<16x17xf32, #tpu.memory_space<vmem>>, vector<16x17xf32>
    %cst_19 = arith.constant dense<0.000000e+00> : vector<128x17xf32>
    %29 = tpu.matmul %27, %28, %cst_19 {dimension_numbers = #tpu.dot_dimension_numbers<[1], [0], [0], [1], [0, 0, 1, 1], [], []>} : vector<128x16xf32>, vector<16x17xf32>, vector<128x17xf32> -> vector<128x17xf32>
    %c0_20 = arith.constant 0 : index
    %c0_21 = arith.constant 0 : index
    %30 = vector.load %arg9[%c0_20, %c0_21] : memref<1x17xf32, #tpu.memory_space<vmem>>, vector<1x17xf32>
    %31 = vector.broadcast %30 : vector<1x17xf32> to vector<128x17xf32>
    %32 = arith.addf %29, %31 : vector<128x17xf32>
    %c0_i32_22 = arith.constant 0 : i32
    %c8_i32_23 = arith.constant 8 : i32
    %33 = arith.muli %c0_i32_22, %c8_i32_23 : i32
    %34 = tpu.assume_multiple %33, 8 : i32
    %c0_24 = arith.constant 0 : index
    %c0_25 = arith.constant 0 : index
    %35 = vector.load %arg19[%c0_24, %c0_25] : memref<8x128xi32, #tpu.memory_space<vmem>>, vector<8x128xi32>
    %36 = vector.broadcast %34 : i32 to vector<1x128xi32>
    %37 = arith.subi %4, %36 : vector<1x128xi32>
    %38 = vector.broadcast %37 : vector<1x128xi32> to vector<8x128xi32>
    %39 = arith.cmpi eq, %35, %38 : vector<8x128xi32>
    %40 = arith.extui %39 : vector<8x128xi1> to vector<8x128xi32>
    %41 = arith.sitofp %40 : vector<8x128xi32> to vector<8x128xf32>
    %42 = arith.index_cast %34 : i32 to index
    %c0_26 = arith.constant 0 : index
    %43 = vector.load %arg17[%42, %c0_26] : memref<8x17xf32, #tpu.memory_space<vmem>>, vector<8x17xf32>
    %cst_27 = arith.constant dense<0.000000e+00> : vector<8x17xf32>
    %44 = tpu.matmul %41, %32, %cst_27 {dimension_numbers = #tpu.dot_dimension_numbers<[1], [0], [0], [1], [0, 0, 1, 1], [], []>} : vector<8x128xf32>, vector<128x17xf32>, vector<8x17xf32> -> vector<8x17xf32>
    %45 = arith.addf %43, %44 : vector<8x17xf32>
    %46 = arith.index_cast %34 : i32 to index
    %c0_28 = arith.constant 0 : index
    %47 = vector.load %arg17[%46, %c0_28] : memref<8x17xf32, #tpu.memory_space<vmem>>, vector<8x17xf32>
    tpu.vector_store %arg17[%46, %c0_28], %45 {strides = array<i32>} : memref<8x17xf32, #tpu.memory_space<vmem>>, vector<8x17xf32>,
    %c1_i32_29 = arith.constant 1 : i32
    %c0_i32_30 = arith.constant 0 : i32
    %48 = arith.cmpi eq, %arg0, %c0_i32_30 : i32
    %49 = arith.extui %48 : i1 to i32
    %c0_i32_31 = arith.constant 0 : i32
    %50 = arith.cmpi ne, %49, %c0_i32_31 : i32
    scf.if %50 {
      %c0_32 = arith.constant 0 : index
      %c0_33 = arith.constant 0 : index
      %51 = vector.load %arg17[%c0_32, %c0_33] : memref<8x17xf32, #tpu.memory_space<vmem>>, vector<8x17xf32>
      %52 = vector.extract_strided_slice %51 {offsets = [0, 0], sizes = [8, 16], strides = [1, 1]} : vector<8x17xf32> to vector<8x16xf32>
      %53 = vector.extract_strided_slice %51 {offsets = [0, 16], sizes = [8, 1], strides = [1, 1]} : vector<8x17xf32> to vector<8x1xf32>
      %cst_34 = arith.constant 1.000000e+00 : f32
      %54 = vector.broadcast %cst_34 : f32 to vector<8x1xf32>
      %55 = arith.maximumf %53, %54 : vector<8x1xf32>
      %56 = vector.broadcast %55 : vector<8x1xf32> to vector<8x16xf32>
      %57 = arith.divf %52, %56 : vector<8x16xf32>
      %c0_35 = arith.constant 0 : index
      %c0_36 = arith.constant 0 : index
      %58 = vector.load %arg1[%c0_35, %c0_36] : memref<8x4xf32, #tpu.memory_space<vmem>>, vector<8x4xf32>
      %c0_37 = arith.constant 0 : index
      %c0_38 = arith.constant 0 : index
      %59 = vector.load %arg10[%c0_37, %c0_38] : memref<4x8xf32, #tpu.memory_space<vmem>>, vector<4x8xf32>
      %cst_39 = arith.constant dense<0.000000e+00> : vector<8x8xf32>
      %60 = tpu.matmul %58, %59, %cst_39 {dimension_numbers = #tpu.dot_dimension_numbers<[1], [0], [0], [1], [0, 0, 1, 1], [], []>} : vector<8x4xf32>, vector<4x8xf32>, vector<8x8xf32> -> vector<8x8xf32>
      %c0_40 = arith.constant 0 : index
      %c0_41 = arith.constant 0 : index
      %61 = vector.load %arg11[%c0_40, %c0_41] : memref<16x8xf32, #tpu.memory_space<vmem>>, vector<16x8xf32>
      %cst_42 = arith.constant dense<0.000000e+00> : vector<8x8xf32>
      %62 = tpu.matmul %57, %61, %cst_42 {dimension_numbers = #tpu.dot_dimension_numbers<[1], [0], [0], [1], [0, 0, 1, 1], [], []>} : vector<8x16xf32>, vector<16x8xf32>, vector<8x8xf32> -> vector<8x8xf32>
      %63 = arith.addf %60, %62 : vector<8x8xf32>
      %c0_43 = arith.constant 0 : index
      %c0_44 = arith.constant 0 : index
      %64 = vector.load %arg12[%c0_43, %c0_44] : memref<1x8xf32, #tpu.memory_space<vmem>>, vector<1x8xf32>
      %65 = vector.broadcast %64 : vector<1x8xf32> to vector<8x8xf32>
      %66 = arith.addf %63, %65 : vector<8x8xf32>
      %cst_45 = arith.constant 0.000000e+00 : f32
      %67 = vector.broadcast %cst_45 : f32 to vector<8x8xf32>
      %68 = arith.maximumf %66, %67 : vector<8x8xf32>
      %c0_46 = arith.constant 0 : index
      %c0_47 = arith.constant 0 : index
      %69 = vector.load %arg13[%c0_46, %c0_47] : memref<8x4xf32, #tpu.memory_space<vmem>>, vector<8x4xf32>
      %cst_48 = arith.constant dense<0.000000e+00> : vector<8x4xf32>
      %70 = tpu.matmul %68, %69, %cst_48 {dimension_numbers = #tpu.dot_dimension_numbers<[1], [0], [0], [1], [0, 0, 1, 1], [], []>} : vector<8x8xf32>, vector<8x4xf32>, vector<8x4xf32> -> vector<8x4xf32>
      %c0_49 = arith.constant 0 : index
      %c0_50 = arith.constant 0 : index
      %71 = vector.load %arg14[%c0_49, %c0_50] : memref<1x4xf32, #tpu.memory_space<vmem>>, vector<1x4xf32>
      %72 = vector.broadcast %71 : vector<1x4xf32> to vector<8x4xf32>
      %73 = arith.addf %70, %72 : vector<8x4xf32>
      %c0_51 = arith.constant 0 : index
      %c0_52 = arith.constant 0 : index
      %74 = vector.load %arg15[%c0_51, %c0_52] : memref<8x4xf32, #tpu.memory_space<vmem>>, vector<8x4xf32>
      tpu.vector_store %arg15[%c0_51, %c0_52], %73 {strides = array<i32>} : memref<8x4xf32, #tpu.memory_space<vmem>>, vector<8x4xf32>,
    } else {
    }
    return
  }
  func.func @transform_0(%arg0: i32) -> (i32, i32) {
    %c0_i32 = arith.constant 0 : i32
    %c0_i32_0 = arith.constant 0 : i32
    %c0_i32_1 = arith.constant 0 : i32
    return %c0_i32, %c0_i32_0 : i32, i32
  }
  func.func @transform_1(%arg0: i32) -> (i32, i32) {
    %c0_i32 = arith.constant 0 : i32
    %c0_i32_0 = arith.constant 0 : i32
    return %arg0, %c0_i32 : i32, i32
  }
  func.func @transform_2(%arg0: i32) -> (i32, i32) {
    %c0_i32 = arith.constant 0 : i32
    %c0_i32_0 = arith.constant 0 : i32
    return %c0_i32, %arg0 : i32, i32
  }
  func.func @transform_3(%arg0: i32) -> (i32, i32) {
    %c0_i32 = arith.constant 0 : i32
    %c0_i32_0 = arith.constant 0 : i32
    return %arg0, %c0_i32 : i32, i32
  }
  func.func @transform_4(%arg0: i32) -> (i32, i32) {
    %c0_i32 = arith.constant 0 : i32
    %c0_i32_0 = arith.constant 0 : i32
    %c0_i32_1 = arith.constant 0 : i32
    return %c0_i32, %c0_i32_0 : i32, i32
  }
  func.func @transform_5(%arg0: i32) -> (i32, i32) {
    %c0_i32 = arith.constant 0 : i32
    %c0_i32_0 = arith.constant 0 : i32
    %c0_i32_1 = arith.constant 0 : i32
    return %c0_i32, %c0_i32_0 : i32, i32
  }
  func.func @transform_6(%arg0: i32) -> (i32, i32) {
    %c0_i32 = arith.constant 0 : i32
    %c0_i32_0 = arith.constant 0 : i32
    %c0_i32_1 = arith.constant 0 : i32
    return %c0_i32, %c0_i32_0 : i32, i32
  }
  func.func @transform_7(%arg0: i32) -> (i32, i32) {
    %c0_i32 = arith.constant 0 : i32
    %c0_i32_0 = arith.constant 0 : i32
    %c0_i32_1 = arith.constant 0 : i32
    return %c0_i32, %c0_i32_0 : i32, i32
  }
  func.func @transform_8(%arg0: i32) -> (i32, i32) {
    %c0_i32 = arith.constant 0 : i32
    %c0_i32_0 = arith.constant 0 : i32
    %c0_i32_1 = arith.constant 0 : i32
    return %c0_i32, %c0_i32_0 : i32, i32
  }
  func.func @transform_9(%arg0: i32) -> (i32, i32) {
    %c0_i32 = arith.constant 0 : i32
    %c0_i32_0 = arith.constant 0 : i32
    %c0_i32_1 = arith.constant 0 : i32
    return %c0_i32, %c0_i32_0 : i32, i32
  }
  func.func @transform_10(%arg0: i32) -> (i32, i32) {
    %c0_i32 = arith.constant 0 : i32
    %c0_i32_0 = arith.constant 0 : i32
    %c0_i32_1 = arith.constant 0 : i32
    return %c0_i32, %c0_i32_0 : i32, i32
  }
  func.func @transform_11(%arg0: i32) -> (i32, i32) {
    %c0_i32 = arith.constant 0 : i32
    %c0_i32_0 = arith.constant 0 : i32
    %c0_i32_1 = arith.constant 0 : i32
    return %c0_i32, %c0_i32_0 : i32, i32
  }
  func.func @transform_12(%arg0: i32) -> (i32, i32) {
    %c0_i32 = arith.constant 0 : i32
    %c0_i32_0 = arith.constant 0 : i32
    %c0_i32_1 = arith.constant 0 : i32
    return %c0_i32, %c0_i32_0 : i32, i32
  }
  func.func @transform_13(%arg0: i32) -> (i32, i32) {
    %c0_i32 = arith.constant 0 : i32
    %c0_i32_0 = arith.constant 0 : i32
    %c0_i32_1 = arith.constant 0 : i32
    return %c0_i32, %c0_i32_0 : i32, i32
  }
  func.func @transform_14(%arg0: i32) -> (i32, i32) {
    %c0_i32 = arith.constant 0 : i32
    %c0_i32_0 = arith.constant 0 : i32
    %c0_i32_1 = arith.constant 0 : i32
    return %c0_i32, %c0_i32_0 : i32, i32
  }
}

</mosaic_0001>

<llo_original>
// kernel: tpu_custom_call.1
$region0: #{tpu_custom_call.1}
  #allocation0 [shape = 'u32[]', space=smem, size = 0x4, offset = 0x4, fixed_abs, tag = 'smem constant byte address 0x4 - core index']
  #allocation1 [shape = 'u32[144,128]{1,0:T(1,128)}', space=vmem, size = 0x12000, scoped, tag = 'internal scratch']
  #allocation2 [shape = 'f32[8,16]{1,0:T(8,128)}', space=vmem, size = 0x1000, scoped, tag = 'scratch operand']
  #allocation3 [shape = 'f32[8,17]{1,0:T(8,128)}', space=vmem, size = 0x1000, scoped, tag = 'scratch operand']
  #allocation4 [shape = 's32[128,8]{1,0:T(8,128)}', space=vmem, size = 0x10000, scoped, tag = 'scratch operand']
  #allocation5 [shape = 's32[8,128]{1,0:T(8,128)}', space=vmem, size = 0x1000, scoped, tag = 'scratch operand']
  %s0 = inlined_call_operand.vmem [shape: f32[8,4], index: 0, kind: input, shape index: {}]
  %s1 = inlined_call_operand.vmem [shape: s32[128,1], index: 1, kind: input, shape index: {}]
  %s2 = inlined_call_operand.vmem [shape: s32[1,128], index: 2, kind: input, shape index: {}]
  %s3 = inlined_call_operand.vmem [shape: f32[128,4], index: 3, kind: input, shape index: {}]
  %s4 = inlined_call_operand.vmem [shape: f32[4,16], index: 4, kind: input, shape index: {}]
  %s5 = inlined_call_operand.vmem [shape: f32[4,16], index: 5, kind: input, shape index: {}]
  %s6 = inlined_call_operand.vmem [shape: f32[1,16], index: 6, kind: input, shape index: {}]
  %s7 = inlined_call_operand.vmem [shape: f32[16,17], index: 7, kind: input, shape index: {}]
  %s8 = inlined_call_operand.vmem [shape: f32[1,17], index: 8, kind: input, shape index: {}]
  %s9 = inlined_call_operand.vmem [shape: f32[4,8], index: 9, kind: input, shape index: {}]
  %s10 = inlined_call_operand.vmem [shape: f32[16,8], index: 10, kind: input, shape index: {}]
  %s11 = inlined_call_operand.vmem [shape: f32[1,8], index: 11, kind: input, shape index: {}]
  %s12 = inlined_call_operand.vmem [shape: f32[8,4], index: 12, kind: input, shape index: {}]
  %s13 = inlined_call_operand.vmem [shape: f32[1,4], index: 13, kind: input, shape index: {}]
  %s14 = inlined_call_operand.vmem [shape: f32[8,4], index: 14, kind: output, shape index: {}]
  %s15 = sld [smem:[#allocation0]]
  $region74: #{tpu_custom_call.1} parent=0
    _
  %s17 = ssub.s32 1, %s15
  %s18 = scalar_select 0, %s17, %s15
  // Predicated region
  $region2: #{tpu_custom_call.1} parent=0 // pred_check
    _
  $region3: #{tpu_custom_call.1} parent=0 // pred_check_branch
    %20 = sbr.rel (0) target = $region5
  $region4: #{tpu_custom_call.1} parent=0 // pred_region
    _
  $region5: #{tpu_custom_call.1} parent=0 // pred_fallthru
    _
  // Predicated region
  $region6: #{tpu_custom_call.1} parent=0 // pred_check
    _
  $region7: #{tpu_custom_call.1} parent=0 // pred_check_branch
    %22 = sbr.rel (0) target = $region9
  $region8: #{tpu_custom_call.1} parent=0 // pred_region
    _
  $region9: #{tpu_custom_call.1} parent=0 // pred_fallthru
    _
  // Predicated region
  $region10: #{tpu_custom_call.1} parent=0 // pred_check
    _
  $region11: #{tpu_custom_call.1} parent=0 // pred_check_branch
    %24 = sbr.rel (0) target = $region13
  $region12: #{tpu_custom_call.1} parent=0 // pred_region
    _
  $region13: #{tpu_custom_call.1} parent=0 // pred_fallthru
    _
  // Predicated region
  $region14: #{tpu_custom_call.1} parent=0 // pred_check
    _
  $region15: #{tpu_custom_call.1} parent=0 // pred_check_branch
    %26 = sbr.rel (0) target = $region17
  $region16: #{tpu_custom_call.1} parent=0 // pred_region
    _
  $region17: #{tpu_custom_call.1} parent=0 // pred_fallthru
    _
  // Predicated region
  $region18: #{tpu_custom_call.1} parent=0 // pred_check
    _
  $region19: #{tpu_custom_call.1} parent=0 // pred_check_branch
    %28 = sbr.rel (0) target = $region21
  $region20: #{tpu_custom_call.1} parent=0 // pred_region
    _
  $region21: #{tpu_custom_call.1} parent=0 // pred_fallthru
    _
  // Predicated region
  $region22: #{tpu_custom_call.1} parent=0 // pred_check
    _
  $region23: #{tpu_custom_call.1} parent=0 // pred_check_branch
    %30 = sbr.rel (0) target = $region25
  $region24: #{tpu_custom_call.1} parent=0 // pred_region
    _
  $region25: #{tpu_custom_call.1} parent=0 // pred_fallthru
    _
  // Predicated region
  $region26: #{tpu_custom_call.1} parent=0 // pred_check
    _
  $region27: #{tpu_custom_call.1} parent=0 // pred_check_branch
    %32 = sbr.rel (0) target = $region29
  $region28: #{tpu_custom_call.1} parent=0 // pred_region
    _
  $region29: #{tpu_custom_call.1} parent=0 // pred_fallthru
    _
  // Predicated region
  $region30: #{tpu_custom_call.1} parent=0 // pred_check
    _
  $region31: #{tpu_custom_call.1} parent=0 // pred_check_branch
    %34 = sbr.rel (0) target = $region33
  $region32: #{tpu_custom_call.1} parent=0 // pred_region
    _
  $region33: #{tpu_custom_call.1} parent=0 // pred_fallthru
    _
  // Predicated region
  $region34: #{tpu_custom_call.1} parent=0 // pred_check
    _
  $region35: #{tpu_custom_call.1} parent=0 // pred_check_branch
    %36 = sbr.rel (0) target = $region37
  $region36: #{tpu_custom_call.1} parent=0 // pred_region
    _
  $region37: #{tpu_custom_call.1} parent=0 // pred_fallthru
    _
  // Predicated region
  $region38: #{tpu_custom_call.1} parent=0 // pred_check
    _
  $region39: #{tpu_custom_call.1} parent=0 // pred_check_branch
    %38 = sbr.rel (0) target = $region41
  $region40: #{tpu_custom_call.1} parent=0 // pred_region
    _
  $region41: #{tpu_custom_call.1} parent=0 // pred_fallthru
    _
  // Predicated region
  $region42: #{tpu_custom_call.1} parent=0 // pred_check
    _
  $region43: #{tpu_custom_call.1} parent=0 // pred_check_branch
    %40 = sbr.rel (0) target = $region45
  $region44: #{tpu_custom_call.1} parent=0 // pred_region
    _
  $region45: #{tpu_custom_call.1} parent=0 // pred_fallthru
    _
  // Predicated region
  $region46: #{tpu_custom_call.1} parent=0 // pred_check
    _
  $region47: #{tpu_custom_call.1} parent=0 // pred_check_branch
    %42 = sbr.rel (0) target = $region49
  $region48: #{tpu_custom_call.1} parent=0 // pred_region
    _
  $region49: #{tpu_custom_call.1} parent=0 // pred_fallthru
    _
  // Predicated region
  $region50: #{tpu_custom_call.1} parent=0 // pred_check
    _
  $region51: #{tpu_custom_call.1} parent=0 // pred_check_branch
    %44 = sbr.rel (0) target = $region53
  $region52: #{tpu_custom_call.1} parent=0 // pred_region
    _
  $region53: #{tpu_custom_call.1} parent=0 // pred_fallthru
    _
  // Predicated region
  $region54: #{tpu_custom_call.1} parent=0 // pred_check
    _
  $region55: #{tpu_custom_call.1} parent=0 // pred_check_branch
    %46 = sbr.rel (0) target = $region57
  $region56: #{tpu_custom_call.1} parent=0 // pred_region
    _
  $region57: #{tpu_custom_call.1} parent=0 // pred_fallthru
    _
  %p47 = scmp.eq.s32.totalorder 0, 0
  // Predicated region
  $region58: #{tpu_custom_call.1} parent=0 // pred_check
    %p48 = pneg %p47
  $region59: #{tpu_custom_call.1} parent=0 // pred_check_branch
    %50 = sbr.rel (%p48) target = $region61
  $region60: #{tpu_custom_call.1} parent=0 // pred_region
    %v51 = vld [vmem:[%s0] sm:$0xff]
    %v52 = vld [vmem:[%s4] sm:$0xf]
    %vm53 = vcmask 31744
    %v55 = vsel %vm53, %v51, 0
    %vm57 = vcmask 1043456
    %v59 = vsel %vm57, %v52, 0
    %61 = vmatprep.subr.mxu0 0.0
    %62 = vmatpush1.msra.mxu0 0.0
    %63 = vmatprep.subr.mxu0 0.0
    %64 = vmatpush1.msra.mxu0 0.0
    %65 = vmatprep.subr.mxu0 0.0
    %66 = vmatpush1.msra.mxu0 0.0
    %67 = vmatprep.subr.mxu0 0.0
    %68 = vmatpush1.msra.mxu0 0.0
    %69 = vmatprep.subr.mxu0 0.0
    %70 = vmatpush1.msra.mxu0 0.0
    %71 = vmatprep.subr.mxu0 0.0
    %72 = vmatpush1.msra.mxu0 0.0
    %73 = vmatprep.subr.mxu0 0.0
    %74 = vmatpush1.msra.mxu0 0.0
    %75 = vmatprep.subr.mxu0 0.0
    %76 = vmatpush1.msra.mxu0 0.0
    %77 = vmatprep.subr.mxu0 0.0
    %78 = vmatpush1.msra.mxu0 0.0
    %79 = vmatprep.subr.mxu0 0.0
    %80 = vmatpush1.msra.mxu0 0.0
    %81 = vmatprep.subr.mxu0 0.0
    %82 = vmatpush1.msra.mxu0 0.0
    %83 = vmatprep.subr.mxu0 0.0
    %84 = vmatpush1.msra.mxu0 0.0
    %85 = vmatprep.subr.mxu0 0.0
    %86 = vmatpush1.msra.mxu0 0.0
    %87 = vmatprep.subr.mxu0 0.0
    %88 = vmatpush1.msra.mxu0 0.0
    %89 = vmatprep.subr.mxu0 0.0
    %90 = vmatpush1.msra.mxu0 0.0
    %91 = vmatprep.subr.mxu0 0.0
    %92 = vmatpush1.msra.mxu0 %v59
    %93 = vmatprep.subr.mxu0 0.0
    %94 = vmatpush2.msra.mxu0 0.0
    %95 = vmatprep.subr.mxu0 0.0
    %96 = vmatpush2.msra.mxu0 0.0
    %97 = vmatprep.subr.mxu0 0.0
    %98 = vmatpush2.msra.mxu0 0.0
    %99 = vmatprep.subr.mxu0 0.0
    %100 = vmatpush2.msra.mxu0 0.0
    %101 = vmatprep.subr.mxu0 0.0
    %102 = vmatpush2.msra.mxu0 0.0
    %103 = vmatprep.subr.mxu0 0.0
    %104 = vmatpush2.msra.mxu0 0.0
    %105 = vmatprep.subr.mxu0 0.0
    %106 = vmatpush2.msra.mxu0 0.0
    %107 = vmatprep.subr.mxu0 0.0
    %108 = vmatpush2.msra.mxu0 0.0
    %109 = vmatprep.subr.mxu0 0.0
    %110 = vmatpush2.msra.mxu0 0.0
    %111 = vmatprep.subr.mxu0 0.0
    %112 = vmatpush2.msra.mxu0 0.0
    %113 = vmatprep.subr.mxu0 0.0
    %114 = vmatpush2.msra.mxu0 0.0
    %115 = vmatprep.subr.mxu0 0.0
    %116 = vmatpush2.msra.mxu0 0.0
    %117 = vmatprep.subr.mxu0 0.0
    %118 = vmatpush2.msra.mxu0 0.0
    %119 = vmatprep.subr.mxu0 0.0
    %120 = vmatpush2.msra.mxu0 0.0
    %121 = vmatprep.subr.mxu0 0.0
    %122 = vmatpush2.msra.mxu0 0.0
    %123 = vmatprep.subr.mxu0 0.0
    %124 = vmatpush2.msra.mxu0 0.0
    %125 = vmatprep.mubr.f32.mxu0 0.0
    %126 = vmatmul.mubr.f32.gmra.mxu0 %v55
    %v127 = vpop.f32.mrf.mxu0
    %v128 = vadd.f32 0.0, %v127
    %v129 = vpop.f32.mrf.mxu0
    %130 = vdwg.mxu0
    %vm131 = vcmask 130048
    %132 = vst.msk [vmem:[#allocation2] sm:$0xff] %vm131, %v128
    %vm133 = vcmask 138240
    %134 = vst.msk [vmem:[#allocation3] sm:$0xff] %vm133, 0.0
    %v135 = vlaneseq
    %v136 = vand.u32 %v135, 127
    %vm137 = vcmask 64512
    %138 = vst.msk [vmem:[#allocation4] sm:$0xff] %vm137, %v136
    %139 = vst.msk [vmem:[#allocation4 + $0x8] sm:$0xff] %vm137, %v136
    %140 = vst.msk [vmem:[#allocation4 + $0x10] sm:$0xff] %vm137, %v136
    %141 = vst.msk [vmem:[#allocation4 + $0x18] sm:$0xff] %vm137, %v136
    %142 = vst.msk [vmem:[#allocation4 + $0x20] sm:$0xff] %vm137, %v136
    %143 = vst.msk [vmem:[#allocation4 + $0x28] sm:$0xff] %vm137, %v136
    %144 = vst.msk [vmem:[#allocation4 + $0x30] sm:$0xff] %vm137, %v136
    %145 = vst.msk [vmem:[#allocation4 + $0x38] sm:$0xff] %vm137, %v136
    %146 = vst.msk [vmem:[#allocation4 + $0x40] sm:$0xff] %vm137, %v136
    %147 = vst.msk [vmem:[#allocation4 + $0x48] sm:$0xff] %vm137, %v136
    %148 = vst.msk [vmem:[#allocation4 + $0x50] sm:$0xff] %vm137, %v136
    %149 = vst.msk [vmem:[#allocation4 + $0x58] sm:$0xff] %vm137, %v136
    %150 = vst.msk [vmem:[#allocation4 + $0x60] sm:$0xff] %vm137, %v136
    %151 = vst.msk [vmem:[#allocation4 + $0x68] sm:$0xff] %vm137, %v136
    %152 = vst.msk [vmem:[#allocation4 + $0x70] sm:$0xff] %vm137, %v136
    %153 = vst.msk [vmem:[#allocation4 + $0x78] sm:$0xff] %vm137, %v136
    %v154 = vlaneseq
    %v155 = vshrl.u32 %v154, 7
    %156 = vst [vmem:[#allocation5] sm:$0xff] %v155
  $region61: #{tpu_custom_call.1} parent=0 // pred_fallthru
    _
  %v157 = vld [vmem:[%s1] sm:$0xff]
  %v158 = vld [vmem:[%s1 + $0x8] sm:$0xff]
  %v159 = vld [vmem:[%s1 + $0x10] sm:$0xff]
  %v160 = vld [vmem:[%s1 + $0x18] sm:$0xff]
  %v161 = vld [vmem:[%s1 + $0x20] sm:$0xff]
  %v162 = vld [vmem:[%s1 + $0x28] sm:$0xff]
  %v163 = vld [vmem:[%s1 + $0x30] sm:$0xff]
  %v164 = vld [vmem:[%s1 + $0x38] sm:$0xff]
  %v165 = vld [vmem:[%s1 + $0x40] sm:$0xff]
  %v166 = vld [vmem:[%s1 + $0x48] sm:$0xff]
  %v167 = vld [vmem:[%s1 + $0x50] sm:$0xff]
  %v168 = vld [vmem:[%s1 + $0x58] sm:$0xff]
  %v169 = vld [vmem:[%s1 + $0x60] sm:$0xff]
  %v170 = vld [vmem:[%s1 + $0x68] sm:$0xff]
  %v171 = vld [vmem:[%s1 + $0x70] sm:$0xff]
  %v172 = vld [vmem:[%s1 + $0x78] sm:$0xff]
  %v173 = vld [vmem:[%s2] sm:$0x1]
  %v174 = vld [vmem:[%s3] sm:$0xff]
  %v175 = vld [vmem:[%s3 + $0x8] sm:$0xff]
  %v176 = vld [vmem:[%s3 + $0x10] sm:$0xff]
  %v177 = vld [vmem:[%s3 + $0x18] sm:$0xff]
  %v178 = vld [vmem:[%s3 + $0x20] sm:$0xff]
  %v179 = vld [vmem:[%s3 + $0x28] sm:$0xff]
  %v180 = vld [vmem:[%s3 + $0x30] sm:$0xff]
  %v181 = vld [vmem:[%s3 + $0x38] sm:$0xff]
  %v182 = vld [vmem:[%s3 + $0x40] sm:$0xff]
  %v183 = vld [vmem:[%s3 + $0x48] sm:$0xff]
  %v184 = vld [vmem:[%s3 + $0x50] sm:$0xff]
  %v185 = vld [vmem:[%s3 + $0x58] sm:$0xff]
  %v186 = vld [vmem:[%s3 + $0x60] sm:$0xff]
  %v187 = vld [vmem:[%s3 + $0x68] sm:$0xff]
  %v188 = vld [vmem:[%s3 + $0x70] sm:$0xff]
  %v189 = vld [vmem:[%s3 + $0x78] sm:$0xff]
  %v190 = vld [vmem:[%s5] sm:$0xf]
  %v191 = vld [vmem:[%s6] sm:$0x1]
  %v193 = vlaneseq
  %v194 = vshrl.u32 %v193, 7
  %v195 = vsub.s32 0, %v194
  %v196 = vrot.slane %v191, %v195
  %vm198 = vcmask 31744
  %v200 = vsel %vm198, %v174, 0
  %v203 = vsel %vm198, %v175, 0
  %v206 = vsel %vm198, %v176, 0
  %v209 = vsel %vm198, %v177, 0
  %v212 = vsel %vm198, %v178, 0
  %v215 = vsel %vm198, %v179, 0
  %v218 = vsel %vm198, %v180, 0
  %v221 = vsel %vm198, %v181, 0
  %v224 = vsel %vm198, %v182, 0
  %v227 = vsel %vm198, %v183, 0
  %v230 = vsel %vm198, %v184, 0
  %v233 = vsel %vm198, %v185, 0
  %v236 = vsel %vm198, %v186, 0
  %v239 = vsel %vm198, %v187, 0
  %v242 = vsel %vm198, %v188, 0
  %v245 = vsel %vm198, %v189, 0
  %vm247 = vcmask 1043456
  %v249 = vsel %vm247, %v190, 0
  %251 = vmatprep.subr.mxu0 0.0
  %252 = vmatpush1.msra.mxu0 0.0
  %253 = vmatprep.subr.mxu0 0.0
  %254 = vmatpush1.msra.mxu0 0.0
  %255 = vmatprep.subr.mxu0 0.0
  %256 = vmatpush1.msra.mxu0 0.0
  %257 = vmatprep.subr.mxu0 0.0
  %258 = vmatpush1.msra.mxu0 0.0
  %259 = vmatprep.subr.mxu0 0.0
  %260 = vmatpush1.msra.mxu0 0.0
  %261 = vmatprep.subr.mxu0 0.0
  %262 = vmatpush1.msra.mxu0 0.0
  %263 = vmatprep.subr.mxu0 0.0
  %264 = vmatpush1.msra.mxu0 0.0
  %265 = vmatprep.subr.mxu0 0.0
  %266 = vmatpush1.msra.mxu0 0.0
  %267 = vmatprep.subr.mxu0 0.0
  %268 = vmatpush1.msra.mxu0 0.0
  %269 = vmatprep.subr.mxu0 0.0
  %270 = vmatpush1.msra.mxu0 0.0
  %271 = vmatprep.subr.mxu0 0.0
  %272 = vmatpush1.msra.mxu0 0.0
  %273 = vmatprep.subr.mxu0 0.0
  %274 = vmatpush1.msra.mxu0 0.0
  %275 = vmatprep.subr.mxu0 0.0
  %276 = vmatpush1.msra.mxu0 0.0
  %277 = vmatprep.subr.mxu0 0.0
  %278 = vmatpush1.msra.mxu0 0.0
  %279 = vmatprep.subr.mxu0 0.0
  %280 = vmatpush1.msra.mxu0 0.0
  %281 = vmatprep.subr.mxu0 0.0
  %282 = vmatpush1.msra.mxu0 %v249
  %283 = vmatprep.subr.mxu0 0.0
  %284 = vmatpush2.msra.mxu0 0.0
  %285 = vmatprep.subr.mxu0 0.0
  %286 = vmatpush2.msra.mxu0 0.0
  %287 = vmatprep.subr.mxu0 0.0
  %288 = vmatpush2.msra.mxu0 0.0
  %289 = vmatprep.subr.mxu0 0.0
  %290 = vmatpush2.msra.mxu0 0.0
  %291 = vmatprep.subr.mxu0 0.0
  %292 = vmatpush2.msra.mxu0 0.0
  %293 = vmatprep.subr.mxu0 0.0
  %294 = vmatpush2.msra.mxu0 0.0
  %295 = vmatprep.subr.mxu0 0.0
  %296 = vmatpush2.msra.mxu0 0.0
  %297 = vmatprep.subr.mxu0 0.0
  %298 = vmatpush2.msra.mxu0 0.0
  %299 = vmatprep.subr.mxu0 0.0
  %300 = vmatpush2.msra.mxu0 0.0
  %301 = vmatprep.subr.mxu0 0.0
  %302 = vmatpush2.msra.mxu0 0.0
  %303 = vmatprep.subr.mxu0 0.0
  %304 = vmatpush2.msra.mxu0 0.0
  %305 = vmatprep.subr.mxu0 0.0
  %306 = vmatpush2.msra.mxu0 0.0
  %307 = vmatprep.subr.mxu0 0.0
  %308 = vmatpush2.msra.mxu0 0.0
  %309 = vmatprep.subr.mxu0 0.0
  %310 = vmatpush2.msra.mxu0 0.0
  %311 = vmatprep.subr.mxu0 0.0
  %312 = vmatpush2.msra.mxu0 0.0
  %313 = vmatprep.subr.mxu0 0.0
  %314 = vmatpush2.msra.mxu0 0.0
  %315 = vmatprep.mubr.f32.mxu0 0.0
  %316 = vmatmul.mubr.f32.gmra.mxu0 %v200
  %v317 = vpop.f32.mrf.mxu0
  %v318 = vadd.f32 %v196, %v317
  %v319 = vpop.f32.mrf.mxu0
  %320 = vmatprep.mubr.f32.mxu0 0.0
  %321 = vmatmul.mubr.f32.gmra.mxu0 %v203
  %v322 = vpop.f32.mrf.mxu0
  %v323 = vadd.f32 %v196, %v322
  %v324 = vpop.f32.mrf.mxu0
  %325 = vmatprep.mubr.f32.mxu0 0.0
  %326 = vmatmul.mubr.f32.gmra.mxu0 %v206
  %v327 = vpop.f32.mrf.mxu0
  %v328 = vadd.f32 %v196, %v327
  %v329 = vpop.f32.mrf.mxu0
  %330 = vmatprep.mubr.f32.mxu0 0.0
  %331 = vmatmul.mubr.f32.gmra.mxu0 %v209
  %v332 = vpop.f32.mrf.mxu0
  %v333 = vadd.f32 %v196, %v332
  %v334 = vpop.f32.mrf.mxu0
  %335 = vmatprep.mubr.f32.mxu0 0.0
  %336 = vmatmul.mubr.f32.gmra.mxu0 %v212
  %v337 = vpop.f32.mrf.mxu0
  %v338 = vadd.f32 %v196, %v337
  %v339 = vpop.f32.mrf.mxu0
  %340 = vmatprep.mubr.f32.mxu0 0.0
  %341 = vmatmul.mubr.f32.gmra.mxu0 %v215
  %v342 = vpop.f32.mrf.mxu0
  %v343 = vadd.f32 %v196, %v342
  %v344 = vpop.f32.mrf.mxu0
  %345 = vmatprep.mubr.f32.mxu0 0.0
  %346 = vmatmul.mubr.f32.gmra.mxu0 %v218
  %v347 = vpop.f32.mrf.mxu0
  %v348 = vadd.f32 %v196, %v347
  %v349 = vpop.f32.mrf.mxu0
  %350 = vmatprep.mubr.f32.mxu0 0.0
  %351 = vmatmul.mubr.f32.gmra.mxu0 %v221
  %v352 = vpop.f32.mrf.mxu0
  %v353 = vadd.f32 %v196, %v352
  %v354 = vpop.f32.mrf.mxu0
  %355 = vmatprep.mubr.f32.mxu0 0.0
  %356 = vmatmul.mubr.f32.gmra.mxu0 %v224
  %v357 = vpop.f32.mrf.mxu0
  %v358 = vadd.f32 %v196, %v357
  %v359 = vpop.f32.mrf.mxu0
  %360 = vmatprep.mubr.f32.mxu0 0.0
  %361 = vmatmul.mubr.f32.gmra.mxu0 %v227
  %v362 = vpop.f32.mrf.mxu0
  %v363 = vadd.f32 %v196, %v362
  %v364 = vpop.f32.mrf.mxu0
  %365 = vmatprep.mubr.f32.mxu0 0.0
  %366 = vmatmul.mubr.f32.gmra.mxu0 %v230
  %v367 = vpop.f32.mrf.mxu0
  %v368 = vadd.f32 %v196, %v367
  %v369 = vpop.f32.mrf.mxu0
  %370 = vmatprep.mubr.f32.mxu0 0.0
  %371 = vmatmul.mubr.f32.gmra.mxu0 %v233
  %v372 = vpop.f32.mrf.mxu0
  %v373 = vadd.f32 %v196, %v372
  %v374 = vpop.f32.mrf.mxu0
  %375 = vmatprep.mubr.f32.mxu0 0.0
  %376 = vmatmul.mubr.f32.gmra.mxu0 %v236
  %v377 = vpop.f32.mrf.mxu0
  %v378 = vadd.f32 %v196, %v377
  %v379 = vpop.f32.mrf.mxu0
  %380 = vmatprep.mubr.f32.mxu0 0.0
  %381 = vmatmul.mubr.f32.gmra.mxu0 %v239
  %v382 = vpop.f32.mrf.mxu0
  %v383 = vadd.f32 %v196, %v382
  %v384 = vpop.f32.mrf.mxu0
  %385 = vmatprep.mubr.f32.mxu0 0.0
  %386 = vmatmul.mubr.f32.gmra.mxu0 %v242
  %v387 = vpop.f32.mrf.mxu0
  %v388 = vadd.f32 %v196, %v387
  %v389 = vpop.f32.mrf.mxu0
  %390 = vmatprep.mubr.f32.mxu0 0.0
  %391 = vmatmul.mubr.f32.gmra.mxu0 %v245
  %v392 = vpop.f32.mrf.mxu0
  %v393 = vadd.f32 %v196, %v392
  %v394 = vpop.f32.mrf.mxu0
  %395 = vdwg.mxu0
  %v396 = vld [vmem:[#allocation4] sm:$0xff]
  %v397 = vld [vmem:[#allocation4 + $0x8] sm:$0xff]
  %v398 = vld [vmem:[#allocation4 + $0x10] sm:$0xff]
  %v399 = vld [vmem:[#allocation4 + $0x18] sm:$0xff]
  %v400 = vld [vmem:[#allocation4 + $0x20] sm:$0xff]
  %v401 = vld [vmem:[#allocation4 + $0x28] sm:$0xff]
  %v402 = vld [vmem:[#allocation4 + $0x30] sm:$0xff]
  %v403 = vld [vmem:[#allocation4 + $0x38] sm:$0xff]
  %v404 = vld [vmem:[#allocation4 + $0x40] sm:$0xff]
  %v405 = vld [vmem:[#allocation4 + $0x48] sm:$0xff]
  %v406 = vld [vmem:[#allocation4 + $0x50] sm:$0xff]
  %v407 = vld [vmem:[#allocation4 + $0x58] sm:$0xff]
  %v408 = vld [vmem:[#allocation4 + $0x60] sm:$0xff]
  %v409 = vld [vmem:[#allocation4 + $0x68] sm:$0xff]
  %v410 = vld [vmem:[#allocation4 + $0x70] sm:$0xff]
  %v411 = vld [vmem:[#allocation4 + $0x78] sm:$0xff]
  %v412 = vstv 0
  %v413 = vsub.s32 %v157, %v412
  %v414 = vsub.s32 %v158, %v412
  %v415 = vsub.s32 %v159, %v412
  %v416 = vsub.s32 %v160, %v412
  %v417 = vsub.s32 %v161, %v412
  %v418 = vsub.s32 %v162, %v412
  %v419 = vsub.s32 %v163, %v412
  %v420 = vsub.s32 %v164, %v412
  %v421 = vsub.s32 %v165, %v412
  %v422 = vsub.s32 %v166, %v412
  %v423 = vsub.s32 %v167, %v412
  %v424 = vsub.s32 %v168, %v412
  %v425 = vsub.s32 %v169, %v412
  %v426 = vsub.s32 %v170, %v412
  %v427 = vsub.s32 %v171, %v412
  %v428 = vsub.s32 %v172, %v412
  %429 = vset.pattern.permute.xlu0 0
  %430 = vperm.xlu0 %429, %v413
  %v431 = vpop.permute.xlu0 %430
  %432 = vset.pattern.permute.xlu0 0
  %433 = vperm.xlu0 %432, %v414
  %v434 = vpop.permute.xlu0 %433
  %435 = vset.pattern.permute.xlu0 0
  %436 = vperm.xlu0 %435, %v415
  %v437 = vpop.permute.xlu0 %436
  %438 = vset.pattern.permute.xlu0 0
  %439 = vperm.xlu0 %438, %v416
  %v440 = vpop.permute.xlu0 %439
  %441 = vset.pattern.permute.xlu0 0
  %442 = vperm.xlu0 %441, %v417
  %v443 = vpop.permute.xlu0 %442
  %444 = vset.pattern.permute.xlu0 0
  %445 = vperm.xlu0 %444, %v418
  %v446 = vpop.permute.xlu0 %445
  %447 = vset.pattern.permute.xlu0 0
  %448 = vperm.xlu0 %447, %v419
  %v449 = vpop.permute.xlu0 %448
  %450 = vset.pattern.permute.xlu0 0
  %451 = vperm.xlu0 %450, %v420
  %v452 = vpop.permute.xlu0 %451
  %453 = vset.pattern.permute.xlu0 0
  %454 = vperm.xlu0 %453, %v421
  %v455 = vpop.permute.xlu0 %454
  %456 = vset.pattern.permute.xlu0 0
  %457 = vperm.xlu0 %456, %v422
  %v458 = vpop.permute.xlu0 %457
  %459 = vset.pattern.permute.xlu0 0
  %460 = vperm.xlu0 %459, %v423
  %v461 = vpop.permute.xlu0 %460
  %462 = vset.pattern.permute.xlu0 0
  %463 = vperm.xlu0 %462, %v424
  %v464 = vpop.permute.xlu0 %463
  %465 = vset.pattern.permute.xlu0 0
  %466 = vperm.xlu0 %465, %v425
  %v467 = vpop.permute.xlu0 %466
  %468 = vset.pattern.permute.xlu0 0
  %469 = vperm.xlu0 %468, %v426
  %v470 = vpop.permute.xlu0 %469
  %471 = vset.pattern.permute.xlu0 0
  %472 = vperm.xlu0 %471, %v427
  %v473 = vpop.permute.xlu0 %472
  %474 = vset.pattern.permute.xlu0 0
  %475 = vperm.xlu0 %474, %v428
  %v476 = vpop.permute.xlu0 %475
  %vm477 = vcmp.eq.s32.totalorder %v396, %v431
  %vm478 = vcmp.eq.s32.totalorder %v397, %v434
  %vm479 = vcmp.eq.s32.totalorder %v398, %v437
  %vm480 = vcmp.eq.s32.totalorder %v399, %v440
  %vm481 = vcmp.eq.s32.totalorder %v400, %v443
  %vm482 = vcmp.eq.s32.totalorder %v401, %v446
  %vm483 = vcmp.eq.s32.totalorder %v402, %v449
  %vm484 = vcmp.eq.s32.totalorder %v403, %v452
  %vm485 = vcmp.eq.s32.totalorder %v404, %v455
  %vm486 = vcmp.eq.s32.totalorder %v405, %v458
  %vm487 = vcmp.eq.s32.totalorder %v406, %v461
  %vm488 = vcmp.eq.s32.totalorder %v407, %v464
  %vm489 = vcmp.eq.s32.totalorder %v408, %v467
  %vm490 = vcmp.eq.s32.totalorder %v409, %v470
  %vm491 = vcmp.eq.s32.totalorder %v410, %v473
  %vm492 = vcmp.eq.s32.totalorder %v411, %v476
  %v493 = vsel %vm477, 1, 0
  %v494 = vsel %vm478, 1, 0
  %v495 = vsel %vm479, 1, 0
  %v496 = vsel %vm480, 1, 0
  %v497 = vsel %vm481, 1, 0
  %v498 = vsel %vm482, 1, 0
  %v499 = vsel %vm483, 1, 0
  %v500 = vsel %vm484, 1, 0
  %v501 = vsel %vm485, 1, 0
  %v502 = vsel %vm486, 1, 0
  %v503 = vsel %vm487, 1, 0
  %v504 = vsel %vm488, 1, 0
  %v505 = vsel %vm489, 1, 0
  %v506 = vsel %vm490, 1, 0
  %v507 = vsel %vm491, 1, 0
  %v508 = vsel %vm492, 1, 0
  %v509 = vcvt.s32.f32 %v493
  %v510 = vcvt.s32.f32 %v494
  %v511 = vcvt.s32.f32 %v495
  %v512 = vcvt.s32.f32 %v496
  %v513 = vcvt.s32.f32 %v497
  %v514 = vcvt.s32.f32 %v498
  %v515 = vcvt.s32.f32 %v499
  %v516 = vcvt.s32.f32 %v500
  %v517 = vcvt.s32.f32 %v501
  %v518 = vcvt.s32.f32 %v502
  %v519 = vcvt.s32.f32 %v503
  %v520 = vcvt.s32.f32 %v504
  %v521 = vcvt.s32.f32 %v505
  %v522 = vcvt.s32.f32 %v506
  %v523 = vcvt.s32.f32 %v507
  %v524 = vcvt.s32.f32 %v508
  %v525 = vld [vmem:[#allocation2] sm:$0xff]
  %vm526 = vcmask 64512
  %v528 = vsel %vm526, %v509, 0
  %v531 = vsel %vm526, %v510, 0
  %v534 = vsel %vm526, %v511, 0
  %v537 = vsel %vm526, %v512, 0
  %v540 = vsel %vm526, %v513, 0
  %v543 = vsel %vm526, %v514, 0
  %v546 = vsel %vm526, %v515, 0
  %v549 = vsel %vm526, %v516, 0
  %v552 = vsel %vm526, %v517, 0
  %v555 = vsel %vm526, %v518, 0
  %v558 = vsel %vm526, %v519, 0
  %v561 = vsel %vm526, %v520, 0
  %v564 = vsel %vm526, %v521, 0
  %v567 = vsel %vm526, %v522, 0
  %v570 = vsel %vm526, %v523, 0
  %v573 = vsel %vm526, %v524, 0
  %575 = vmatprep.subr.mxu0 0.0
  %576 = vmatpush1.msra.mxu0 0.0
  %577 = vmatprep.subr.mxu0 0.0
  %578 = vmatpush1.msra.mxu0 0.0
  %579 = vmatprep.subr.mxu0 0.0
  %580 = vmatpush1.msra.mxu0 0.0
  %581 = vmatprep.subr.mxu0 0.0
  %582 = vmatpush1.msra.mxu0 0.0
  %583 = vmatprep.subr.mxu0 0.0
  %584 = vmatpush1.msra.mxu0 0.0
  %585 = vmatprep.subr.mxu0 0.0
  %586 = vmatpush1.msra.mxu0 0.0
  %587 = vmatprep.subr.mxu0 0.0
  %588 = vmatpush1.msra.mxu0 0.0
  %589 = vmatprep.subr.mxu0 0.0
  %590 = vmatpush1.msra.mxu0 0.0
  %591 = vmatprep.subr.mxu0 0.0
  %592 = vmatpush1.msra.mxu0 0.0
  %593 = vmatprep.subr.mxu0 0.0
  %594 = vmatpush1.msra.mxu0 0.0
  %595 = vmatprep.subr.mxu0 0.0
  %596 = vmatpush1.msra.mxu0 0.0
  %597 = vmatprep.subr.mxu0 0.0
  %598 = vmatpush1.msra.mxu0 0.0
  %599 = vmatprep.subr.mxu0 0.0
  %600 = vmatpush1.msra.mxu0 0.0
  %601 = vmatprep.subr.mxu0 0.0
  %602 = vmatpush1.msra.mxu0 0.0
  %603 = vmatprep.subr.mxu0 0.0
  %604 = vmatpush1.msra.mxu0 0.0
  %605 = vmatprep.subr.mxu0 0.0
  %606 = vmatpush1.msra.mxu0 %v525
  %607 = vmatprep.subr.mxu0 0.0
  %608 = vmatpush2.msra.mxu0 0.0
  %609 = vmatprep.subr.mxu0 0.0
  %610 = vmatpush2.msra.mxu0 0.0
  %611 = vmatprep.subr.mxu0 0.0
  %612 = vmatpush2.msra.mxu0 0.0
  %613 = vmatprep.subr.mxu0 0.0
  %614 = vmatpush2.msra.mxu0 0.0
  %615 = vmatprep.subr.mxu0 0.0
  %616 = vmatpush2.msra.mxu0 0.0
  %617 = vmatprep.subr.mxu0 0.0
  %618 = vmatpush2.msra.mxu0 0.0
  %619 = vmatprep.subr.mxu0 0.0
  %620 = vmatpush2.msra.mxu0 0.0
  %621 = vmatprep.subr.mxu0 0.0
  %622 = vmatpush2.msra.mxu0 0.0
  %623 = vmatprep.subr.mxu0 0.0
  %624 = vmatpush2.msra.mxu0 0.0
  %625 = vmatprep.subr.mxu0 0.0
  %626 = vmatpush2.msra.mxu0 0.0
  %627 = vmatprep.subr.mxu0 0.0
  %628 = vmatpush2.msra.mxu0 0.0
  %629 = vmatprep.subr.mxu0 0.0
  %630 = vmatpush2.msra.mxu0 0.0
  %631 = vmatprep.subr.mxu0 0.0
  %632 = vmatpush2.msra.mxu0 0.0
  %633 = vmatprep.subr.mxu0 0.0
  %634 = vmatpush2.msra.mxu0 0.0
  %635 = vmatprep.subr.mxu0 0.0
  %636 = vmatpush2.msra.mxu0 0.0
  %637 = vmatprep.subr.mxu0 0.0
  %638 = vmatpush2.msra.mxu0 0.0
  %639 = vmatprep.mubr.f32.mxu0 0.0
  %640 = vmatmul.mubr.f32.gmra.mxu0 %v528
  %v641 = vpop.f32.mrf.mxu0
  %v642 = vadd.f32 %v318, %v641
  %v643 = vpop.f32.mrf.mxu0
  %644 = vmatprep.mubr.f32.mxu0 0.0
  %645 = vmatmul.mubr.f32.gmra.mxu0 %v531
  %v646 = vpop.f32.mrf.mxu0
  %v647 = vadd.f32 %v323, %v646
  %v648 = vpop.f32.mrf.mxu0
  %649 = vmatprep.mubr.f32.mxu0 0.0
  %650 = vmatmul.mubr.f32.gmra.mxu0 %v534
  %v651 = vpop.f32.mrf.mxu0
  %v652 = vadd.f32 %v328, %v651
  %v653 = vpop.f32.mrf.mxu0
  %654 = vmatprep.mubr.f32.mxu0 0.0
  %655 = vmatmul.mubr.f32.gmra.mxu0 %v537
  %v656 = vpop.f32.mrf.mxu0
  %v657 = vadd.f32 %v333, %v656
  %v658 = vpop.f32.mrf.mxu0
  %659 = vmatprep.mubr.f32.mxu0 0.0
  %660 = vmatmul.mubr.f32.gmra.mxu0 %v540
  %v661 = vpop.f32.mrf.mxu0
  %v662 = vadd.f32 %v338, %v661
  %v663 = vpop.f32.mrf.mxu0
  %664 = vmatprep.mubr.f32.mxu0 0.0
  %665 = vmatmul.mubr.f32.gmra.mxu0 %v543
  %v666 = vpop.f32.mrf.mxu0
  %v667 = vadd.f32 %v343, %v666
  %v668 = vpop.f32.mrf.mxu0
  %669 = vmatprep.mubr.f32.mxu0 0.0
  %670 = vmatmul.mubr.f32.gmra.mxu0 %v546
  %v671 = vpop.f32.mrf.mxu0
  %v672 = vadd.f32 %v348, %v671
  %v673 = vpop.f32.mrf.mxu0
  %674 = vmatprep.mubr.f32.mxu0 0.0
  %675 = vmatmul.mubr.f32.gmra.mxu0 %v549
  %v676 = vpop.f32.mrf.mxu0
  %v677 = vadd.f32 %v353, %v676
  %v678 = vpop.f32.mrf.mxu0
  %679 = vmatprep.mubr.f32.mxu0 0.0
  %680 = vmatmul.mubr.f32.gmra.mxu0 %v552
  %v681 = vpop.f32.mrf.mxu0
  %v682 = vadd.f32 %v358, %v681
  %v683 = vpop.f32.mrf.mxu0
  %684 = vmatprep.mubr.f32.mxu0 0.0
  %685 = vmatmul.mubr.f32.gmra.mxu0 %v555
  %v686 = vpop.f32.mrf.mxu0
  %v687 = vadd.f32 %v363, %v686
  %v688 = vpop.f32.mrf.mxu0
  %689 = vmatprep.mubr.f32.mxu0 0.0
  %690 = vmatmul.mubr.f32.gmra.mxu0 %v558
  %v691 = vpop.f32.mrf.mxu0
  %v692 = vadd.f32 %v368, %v691
  %v693 = vpop.f32.mrf.mxu0
  %694 = vmatprep.mubr.f32.mxu0 0.0
  %695 = vmatmul.mubr.f32.gmra.mxu0 %v561
  %v696 = vpop.f32.mrf.mxu0
  %v697 = vadd.f32 %v373, %v696
  %v698 = vpop.f32.mrf.mxu0
  %699 = vmatprep.mubr.f32.mxu0 0.0
  %700 = vmatmul.mubr.f32.gmra.mxu0 %v564
  %v701 = vpop.f32.mrf.mxu0
  %v702 = vadd.f32 %v378, %v701
  %v703 = vpop.f32.mrf.mxu0
  %704 = vmatprep.mubr.f32.mxu0 0.0
  %705 = vmatmul.mubr.f32.gmra.mxu0 %v567
  %v706 = vpop.f32.mrf.mxu0
  %v707 = vadd.f32 %v383, %v706
  %v708 = vpop.f32.mrf.mxu0
  %709 = vmatprep.mubr.f32.mxu0 0.0
  %710 = vmatmul.mubr.f32.gmra.mxu0 %v570
  %v711 = vpop.f32.mrf.mxu0
  %v712 = vadd.f32 %v388, %v711
  %v713 = vpop.f32.mrf.mxu0
  %714 = vmatprep.mubr.f32.mxu0 0.0
  %715 = vmatmul.mubr.f32.gmra.mxu0 %v573
  %v716 = vpop.f32.mrf.mxu0
  %v717 = vadd.f32 %v393, %v716
  %v718 = vpop.f32.mrf.mxu0
  %719 = vdwg.mxu0
  %v720 = vmax.f32 %v642, 0.0
  %v721 = vmax.f32 %v647, 0.0
  %v722 = vmax.f32 %v652, 0.0
  %v723 = vmax.f32 %v657, 0.0
  %v724 = vmax.f32 %v662, 0.0
  %v725 = vmax.f32 %v667, 0.0
  %v726 = vmax.f32 %v672, 0.0
  %v727 = vmax.f32 %v677, 0.0
  %v728 = vmax.f32 %v682, 0.0
  %v729 = vmax.f32 %v687, 0.0
  %v730 = vmax.f32 %v692, 0.0
  %v731 = vmax.f32 %v697, 0.0
  %v732 = vmax.f32 %v702, 0.0
  %v733 = vmax.f32 %v707, 0.0
  %v734 = vmax.f32 %v712, 0.0
  %v735 = vmax.f32 %v717, 0.0
  %v736 = vld [vmem:[%s7] sm:$0xff]
  %v737 = vld [vmem:[%s7 + $0x8] sm:$0xff]
  %v738 = vld [vmem:[%s8] sm:$0x1]
  %v740 = vlaneseq
  %v741 = vshrl.u32 %v740, 7
  %v742 = vsub.s32 0, %v741
  %v743 = vrot.slane %v738, %v742
  %vm745 = vcmask 130048
  %v747 = vsel %vm745, %v720, 0
  %v750 = vsel %vm745, %v721, 0
  %v753 = vsel %vm745, %v722, 0
  %v756 = vsel %vm745, %v723, 0
  %v759 = vsel %vm745, %v724, 0
  %v762 = vsel %vm745, %v725, 0
  %v765 = vsel %vm745, %v726, 0
  %v768 = vsel %vm745, %v727, 0
  %v771 = vsel %vm745, %v728, 0
  %v774 = vsel %vm745, %v729, 0
  %v777 = vsel %vm745, %v730, 0
  %v780 = vsel %vm745, %v731, 0
  %v783 = vsel %vm745, %v732, 0
  %v786 = vsel %vm745, %v733, 0
  %v789 = vsel %vm745, %v734, 0
  %v792 = vsel %vm745, %v735, 0
  %794 = vmatprep.subr.mxu0 0.0
  %795 = vmatpush1.msra.mxu0 0.0
  %796 = vmatprep.subr.mxu0 0.0
  %797 = vmatpush1.msra.mxu0 0.0
  %798 = vmatprep.subr.mxu0 0.0
  %799 = vmatpush1.msra.mxu0 0.0
  %800 = vmatprep.subr.mxu0 0.0
  %801 = vmatpush1.msra.mxu0 0.0
  %802 = vmatprep.subr.mxu0 0.0
  %803 = vmatpush1.msra.mxu0 0.0
  %804 = vmatprep.subr.mxu0 0.0
  %805 = vmatpush1.msra.mxu0 0.0
  %806 = vmatprep.subr.mxu0 0.0
  %807 = vmatpush1.msra.mxu0 0.0
  %808 = vmatprep.subr.mxu0 0.0
  %809 = vmatpush1.msra.mxu0 0.0
  %810 = vmatprep.subr.mxu0 0.0
  %811 = vmatpush1.msra.mxu0 0.0
  %812 = vmatprep.subr.mxu0 0.0
  %813 = vmatpush1.msra.mxu0 0.0
  %814 = vmatprep.subr.mxu0 0.0
  %815 = vmatpush1.msra.mxu0 0.0
  %816 = vmatprep.subr.mxu0 0.0
  %817 = vmatpush1.msra.mxu0 0.0
  %818 = vmatprep.subr.mxu0 0.0
  %819 = vmatpush1.msra.mxu0 0.0
  %820 = vmatprep.subr.mxu0 0.0
  %821 = vmatpush1.msra.mxu0 0.0
  %822 = vmatprep.subr.mxu0 0.0
  %823 = vmatpush1.msra.mxu0 %v737
  %824 = vmatprep.subr.mxu0 0.0
  %825 = vmatpush1.msra.mxu0 %v736
  %826 = vmatprep.subr.mxu0 0.0
  %827 = vmatpush2.msra.mxu0 0.0
  %828 = vmatprep.subr.mxu0 0.0
  %829 = vmatpush2.msra.mxu0 0.0
  %830 = vmatprep.subr.mxu0 0.0
  %831 = vmatpush2.msra.mxu0 0.0
  %832 = vmatprep.subr.mxu0 0.0
  %833 = vmatpush2.msra.mxu0 0.0
  %834 = vmatprep.subr.mxu0 0.0
  %835 = vmatpush2.msra.mxu0 0.0
  %836 = vmatprep.subr.mxu0 0.0
  %837 = vmatpush2.msra.mxu0 0.0
  %838 = vmatprep.subr.mxu0 0.0
  %839 = vmatpush2.msra.mxu0 0.0
  %840 = vmatprep.subr.mxu0 0.0
  %841 = vmatpush2.msra.mxu0 0.0
  %842 = vmatprep.subr.mxu0 0.0
  %843 = vmatpush2.msra.mxu0 0.0
  %844 = vmatprep.subr.mxu0 0.0
  %845 = vmatpush2.msra.mxu0 0.0
  %846 = vmatprep.subr.mxu0 0.0
  %847 = vmatpush2.msra.mxu0 0.0
  %848 = vmatprep.subr.mxu0 0.0
  %849 = vmatpush2.msra.mxu0 0.0
  %850 = vmatprep.subr.mxu0 0.0
  %851 = vmatpush2.msra.mxu0 0.0
  %852 = vmatprep.subr.mxu0 0.0
  %853 = vmatpush2.msra.mxu0 0.0
  %854 = vmatprep.subr.mxu0 0.0
  %855 = vmatpush2.msra.mxu0 0.0
  %856 = vmatprep.subr.mxu0 0.0
  %857 = vmatpush2.msra.mxu0 0.0
  %858 = vmatprep.mubr.f32.mxu0 0.0
  %859 = vmatmul.mubr.f32.gmra.mxu0 %v747
  %v860 = vpop.f32.mrf.mxu0
  %v861 = vadd.f32 %v743, %v860
  %v862 = vpop.f32.mrf.mxu0
  %863 = vmatprep.mubr.f32.mxu0 0.0
  %864 = vmatmul.mubr.f32.gmra.mxu0 %v750
  %v865 = vpop.f32.mrf.mxu0
  %v866 = vadd.f32 %v743, %v865
  %v867 = vpop.f32.mrf.mxu0
  %868 = vmatprep.mubr.f32.mxu0 0.0
  %869 = vmatmul.mubr.f32.gmra.mxu0 %v753
  %v870 = vpop.f32.mrf.mxu0
  %v871 = vadd.f32 %v743, %v870
  %v872 = vpop.f32.mrf.mxu0
  %873 = vmatprep.mubr.f32.mxu0 0.0
  %874 = vmatmul.mubr.f32.gmra.mxu0 %v756
  %v875 = vpop.f32.mrf.mxu0
  %v876 = vadd.f32 %v743, %v875
  %v877 = vpop.f32.mrf.mxu0
  %878 = vmatprep.mubr.f32.mxu0 0.0
  %879 = vmatmul.mubr.f32.gmra.mxu0 %v759
  %v880 = vpop.f32.mrf.mxu0
  %v881 = vadd.f32 %v743, %v880
  %v882 = vpop.f32.mrf.mxu0
  %883 = vmatprep.mubr.f32.mxu0 0.0
  %884 = vmatmul.mubr.f32.gmra.mxu0 %v762
  %v885 = vpop.f32.mrf.mxu0
  %v886 = vadd.f32 %v743, %v885
  %v887 = vpop.f32.mrf.mxu0
  %888 = vmatprep.mubr.f32.mxu0 0.0
  %889 = vmatmul.mubr.f32.gmra.mxu0 %v765
  %v890 = vpop.f32.mrf.mxu0
  %v891 = vadd.f32 %v743, %v890
  %v892 = vpop.f32.mrf.mxu0
  %893 = vmatprep.mubr.f32.mxu0 0.0
  %894 = vmatmul.mubr.f32.gmra.mxu0 %v768
  %v895 = vpop.f32.mrf.mxu0
  %v896 = vadd.f32 %v743, %v895
  %v897 = vpop.f32.mrf.mxu0
  %898 = vmatprep.mubr.f32.mxu0 0.0
  %899 = vmatmul.mubr.f32.gmra.mxu0 %v771
  %v900 = vpop.f32.mrf.mxu0
  %v901 = vadd.f32 %v743, %v900
  %v902 = vpop.f32.mrf.mxu0
  %903 = vmatprep.mubr.f32.mxu0 0.0
  %904 = vmatmul.mubr.f32.gmra.mxu0 %v774
  %v905 = vpop.f32.mrf.mxu0
  %v906 = vadd.f32 %v743, %v905
  %v907 = vpop.f32.mrf.mxu0
  %908 = vmatprep.mubr.f32.mxu0 0.0
  %909 = vmatmul.mubr.f32.gmra.mxu0 %v777
  %v910 = vpop.f32.mrf.mxu0
  %v911 = vadd.f32 %v743, %v910
  %v912 = vpop.f32.mrf.mxu0
  %913 = vmatprep.mubr.f32.mxu0 0.0
  %914 = vmatmul.mubr.f32.gmra.mxu0 %v780
  %v915 = vpop.f32.mrf.mxu0
  %v916 = vadd.f32 %v743, %v915
  %v917 = vpop.f32.mrf.mxu0
  %918 = vmatprep.mubr.f32.mxu0 0.0
  %919 = vmatmul.mubr.f32.gmra.mxu0 %v783
  %v920 = vpop.f32.mrf.mxu0
  %v921 = vadd.f32 %v743, %v920
  %v922 = vpop.f32.mrf.mxu0
  %923 = vmatprep.mubr.f32.mxu0 0.0
  %924 = vmatmul.mubr.f32.gmra.mxu0 %v786
  %v925 = vpop.f32.mrf.mxu0
  %v926 = vadd.f32 %v743, %v925
  %v927 = vpop.f32.mrf.mxu0
  %928 = vmatprep.mubr.f32.mxu0 0.0
  %929 = vmatmul.mubr.f32.gmra.mxu0 %v789
  %v930 = vpop.f32.mrf.mxu0
  %v931 = vadd.f32 %v743, %v930
  %v932 = vpop.f32.mrf.mxu0
  %933 = vmatprep.mubr.f32.mxu0 0.0
  %934 = vmatmul.mubr.f32.gmra.mxu0 %v792
  %v935 = vpop.f32.mrf.mxu0
  %v936 = vadd.f32 %v743, %v935
  %v937 = vpop.f32.mrf.mxu0
  %938 = vdwg.mxu0
  %v939 = vld [vmem:[#allocation5] sm:$0xff]
  %v940 = vsub.s32 %v173, %v412
  %v941 = vlaneseq
  %v942 = vshrl.u32 %v941, 7
  %v943 = vsub.s32 0, %v942
  %v944 = vrot.slane %v940, %v943
  %vm945 = vcmp.eq.s32.totalorder %v939, %v944
  %v946 = vsel %vm945, 1, 0
  %v947 = vcvt.s32.f32 %v946
  %v948 = vld [vmem:[#allocation3] sm:$0xff]
  %949 = vmatprep.subr.mxu0 0.0
  %950 = vmatpush1.msra.mxu0 %v936
  %951 = vmatprep.subr.mxu0 0.0
  %952 = vmatpush1.msra.mxu0 %v931
  %953 = vmatprep.subr.mxu0 0.0
  %954 = vmatpush1.msra.mxu0 %v926
  %955 = vmatprep.subr.mxu0 0.0
  %956 = vmatpush1.msra.mxu0 %v921
  %957 = vmatprep.subr.mxu0 0.0
  %958 = vmatpush1.msra.mxu0 %v916
  %959 = vmatprep.subr.mxu0 0.0
  %960 = vmatpush1.msra.mxu0 %v911
  %961 = vmatprep.subr.mxu0 0.0
  %962 = vmatpush1.msra.mxu0 %v906
  %963 = vmatprep.subr.mxu0 0.0
  %964 = vmatpush1.msra.mxu0 %v901
  %965 = vmatprep.subr.mxu0 0.0
  %966 = vmatpush1.msra.mxu0 %v896
  %967 = vmatprep.subr.mxu0 0.0
  %968 = vmatpush1.msra.mxu0 %v891
  %969 = vmatprep.subr.mxu0 0.0
  %970 = vmatpush1.msra.mxu0 %v886
  %971 = vmatprep.subr.mxu0 0.0
  %972 = vmatpush1.msra.mxu0 %v881
  %973 = vmatprep.subr.mxu0 0.0
  %974 = vmatpush1.msra.mxu0 %v876
  %975 = vmatprep.subr.mxu0 0.0
  %976 = vmatpush1.msra.mxu0 %v871
  %977 = vmatprep.subr.mxu0 0.0
  %978 = vmatpush1.msra.mxu0 %v866
  %979 = vmatprep.subr.mxu0 0.0
  %980 = vmatpush1.msra.mxu0 %v861
  %981 = vmatprep.subr.mxu0 0.0
  %982 = vmatpush2.msra.mxu0 0.0
  %983 = vmatprep.subr.mxu0 0.0
  %984 = vmatpush2.msra.mxu0 0.0
  %985 = vmatprep.subr.mxu0 0.0
  %986 = vmatpush2.msra.mxu0 0.0
  %987 = vmatprep.subr.mxu0 0.0
  %988 = vmatpush2.msra.mxu0 0.0
  %989 = vmatprep.subr.mxu0 0.0
  %990 = vmatpush2.msra.mxu0 0.0
  %991 = vmatprep.subr.mxu0 0.0
  %992 = vmatpush2.msra.mxu0 0.0
  %993 = vmatprep.subr.mxu0 0.0
  %994 = vmatpush2.msra.mxu0 0.0
  %995 = vmatprep.subr.mxu0 0.0
  %996 = vmatpush2.msra.mxu0 0.0
  %997 = vmatprep.subr.mxu0 0.0
  %998 = vmatpush2.msra.mxu0 0.0
  %999 = vmatprep.subr.mxu0 0.0
  %1000 = vmatpush2.msra.mxu0 0.0
  %1001 = vmatprep.subr.mxu0 0.0
  %1002 = vmatpush2.msra.mxu0 0.0
  %1003 = vmatprep.subr.mxu0 0.0
  %1004 = vmatpush2.msra.mxu0 0.0
  %1005 = vmatprep.subr.mxu0 0.0
  %1006 = vmatpush2.msra.mxu0 0.0
  %1007 = vmatprep.subr.mxu0 0.0
  %1008 = vmatpush2.msra.mxu0 0.0
  %1009 = vmatprep.subr.mxu0 0.0
  %1010 = vmatpush2.msra.mxu0 0.0
  %1011 = vmatprep.subr.mxu0 0.0
  %1012 = vmatpush2.msra.mxu0 0.0
  %1013 = vmatprep.mubr.f32.mxu0 0.0
  %1014 = vmatmul.mubr.f32.gmra.mxu0 %v947
  %v1015 = vpop.f32.mrf.mxu0
  %v1016 = vadd.f32 0.0, %v1015
  %v1017 = vpop.f32.mrf.mxu0
  %1018 = vdwg.mxu0
  %v1019 = vadd.f32 %v948, %v1016
  %vm1020 = vcmask 138240
  %1021 = vst.msk [vmem:[#allocation3] sm:$0xff] %vm1020, %v1019
  // Predicated region
  $region62: #{tpu_custom_call.1} parent=0 // pred_check
    %p1022 = pneg %p47
  $region63: #{tpu_custom_call.1} parent=0 // pred_check_branch
    %1024 = sbr.rel (%p1022) target = $region65
  $region64: #{tpu_custom_call.1} parent=0 // pred_region
    %v1025 = vld [vmem:[#allocation3] sm:$0xff]
    %v1026 = vmax.f32 %v1025, 1.0
    %1028 = vset.pattern.permute.xlu0 16
    %1029 = vperm.xlu0 %1028, %v1026
    %v1030 = vpop.permute.xlu0 %1029
    %v1032 = vrcp.pop %v1030
    %v1033 = vmul.f32 %v1025, %v1032
    %v1034 = vld [vmem:[%s0] sm:$0xff]
    %v1035 = vld [vmem:[%s9] sm:$0xf]
    %v1036 = vld [vmem:[%s10] sm:$0xff]
    %v1037 = vld [vmem:[%s10 + $0x8] sm:$0xff]
    %v1039 = vsel %vm745, %v1033, 0
    %1041 = vmatprep.subr.mxu0 0.0
    %1042 = vmatpush1.msra.mxu0 0.0
    %1043 = vmatprep.subr.mxu0 0.0
    %1044 = vmatpush1.msra.mxu0 0.0
    %1045 = vmatprep.subr.mxu0 0.0
    %1046 = vmatpush1.msra.mxu0 0.0
    %1047 = vmatprep.subr.mxu0 0.0
    %1048 = vmatpush1.msra.mxu0 0.0
    %1049 = vmatprep.subr.mxu0 0.0
    %1050 = vmatpush1.msra.mxu0 0.0
    %1051 = vmatprep.subr.mxu0 0.0
    %1052 = vmatpush1.msra.mxu0 0.0
    %1053 = vmatprep.subr.mxu0 0.0
    %1054 = vmatpush1.msra.mxu0 0.0
    %1055 = vmatprep.subr.mxu0 0.0
    %1056 = vmatpush1.msra.mxu0 0.0
    %1057 = vmatprep.subr.mxu0 0.0
    %1058 = vmatpush1.msra.mxu0 0.0
    %1059 = vmatprep.subr.mxu0 0.0
    %1060 = vmatpush1.msra.mxu0 0.0
    %1061 = vmatprep.subr.mxu0 0.0
    %1062 = vmatpush1.msra.mxu0 0.0
    %1063 = vmatprep.subr.mxu0 0.0
    %1064 = vmatpush1.msra.mxu0 0.0
    %1065 = vmatprep.subr.mxu0 0.0
    %1066 = vmatpush1.msra.mxu0 0.0
    %1067 = vmatprep.subr.mxu0 0.0
    %1068 = vmatpush1.msra.mxu0 0.0
    %1069 = vmatprep.subr.mxu0 0.0
    %1070 = vmatpush1.msra.mxu0 %v1037
    %1071 = vmatprep.subr.mxu0 0.0
    %1072 = vmatpush1.msra.mxu0 %v1036
    %1073 = vmatprep.subr.mxu0 0.0
    %1074 = vmatpush2.msra.mxu0 0.0
    %1075 = vmatprep.subr.mxu0 0.0
    %1076 = vmatpush2.msra.mxu0 0.0
    %1077 = vmatprep.subr.mxu0 0.0
    %1078 = vmatpush2.msra.mxu0 0.0
    %1079 = vmatprep.subr.mxu0 0.0
    %1080 = vmatpush2.msra.mxu0 0.0
    %1081 = vmatprep.subr.mxu0 0.0
    %1082 = vmatpush2.msra.mxu0 0.0
    %1083 = vmatprep.subr.mxu0 0.0
    %1084 = vmatpush2.msra.mxu0 0.0
    %1085 = vmatprep.subr.mxu0 0.0
    %1086 = vmatpush2.msra.mxu0 0.0
    %1087 = vmatprep.subr.mxu0 0.0
    %1088 = vmatpush2.msra.mxu0 0.0
    %1089 = vmatprep.subr.mxu0 0.0
    %1090 = vmatpush2.msra.mxu0 0.0
    %1091 = vmatprep.subr.mxu0 0.0
    %1092 = vmatpush2.msra.mxu0 0.0
    %1093 = vmatprep.subr.mxu0 0.0
    %1094 = vmatpush2.msra.mxu0 0.0
    %1095 = vmatprep.subr.mxu0 0.0
    %1096 = vmatpush2.msra.mxu0 0.0
    %1097 = vmatprep.subr.mxu0 0.0
    %1098 = vmatpush2.msra.mxu0 0.0
    %1099 = vmatprep.subr.mxu0 0.0
    %1100 = vmatpush2.msra.mxu0 0.0
    %1101 = vmatprep.subr.mxu0 0.0
    %1102 = vmatpush2.msra.mxu0 0.0
    %1103 = vmatprep.subr.mxu0 0.0
    %1104 = vmatpush2.msra.mxu0 0.0
    %1105 = vmatprep.mubr.f32.mxu0 0.0
    %1106 = vmatmul.mubr.f32.gmra.mxu0 %v1039
    %v1107 = vpop.f32.mrf.mxu0
    %v1108 = vadd.f32 0.0, %v1107
    %v1109 = vpop.f32.mrf.mxu0
    %1110 = vdwg.mxu0
    %v1112 = vsel %vm198, %v1034, 0
    %v1115 = vsel %vm247, %v1035, 0
    %1117 = vmatprep.subr.mxu0 0.0
    %1118 = vmatpush1.msra.mxu0 0.0
    %1119 = vmatprep.subr.mxu0 0.0
    %1120 = vmatpush1.msra.mxu0 0.0
    %1121 = vmatprep.subr.mxu0 0.0
    %1122 = vmatpush1.msra.mxu0 0.0
    %1123 = vmatprep.subr.mxu0 0.0
    %1124 = vmatpush1.msra.mxu0 0.0
    %1125 = vmatprep.subr.mxu0 0.0
    %1126 = vmatpush1.msra.mxu0 0.0
    %1127 = vmatprep.subr.mxu0 0.0
    %1128 = vmatpush1.msra.mxu0 0.0
    %1129 = vmatprep.subr.mxu0 0.0
    %1130 = vmatpush1.msra.mxu0 0.0
    %1131 = vmatprep.subr.mxu0 0.0
    %1132 = vmatpush1.msra.mxu0 0.0
    %1133 = vmatprep.subr.mxu0 0.0
    %1134 = vmatpush1.msra.mxu0 0.0
    %1135 = vmatprep.subr.mxu0 0.0
    %1136 = vmatpush1.msra.mxu0 0.0
    %1137 = vmatprep.subr.mxu0 0.0
    %1138 = vmatpush1.msra.mxu0 0.0
    %1139 = vmatprep.subr.mxu0 0.0
    %1140 = vmatpush1.msra.mxu0 0.0
    %1141 = vmatprep.subr.mxu0 0.0
    %1142 = vmatpush1.msra.mxu0 0.0
    %1143 = vmatprep.subr.mxu0 0.0
    %1144 = vmatpush1.msra.mxu0 0.0
    %1145 = vmatprep.subr.mxu0 0.0
    %1146 = vmatpush1.msra.mxu0 0.0
    %1147 = vmatprep.subr.mxu0 0.0
    %1148 = vmatpush1.msra.mxu0 %v1115
    %1149 = vmatprep.subr.mxu0 0.0
    %1150 = vmatpush2.msra.mxu0 0.0
    %1151 = vmatprep.subr.mxu0 0.0
    %1152 = vmatpush2.msra.mxu0 0.0
    %1153 = vmatprep.subr.mxu0 0.0
    %1154 = vmatpush2.msra.mxu0 0.0
    %1155 = vmatprep.subr.mxu0 0.0
    %1156 = vmatpush2.msra.mxu0 0.0
    %1157 = vmatprep.subr.mxu0 0.0
    %1158 = vmatpush2.msra.mxu0 0.0
    %1159 = vmatprep.subr.mxu0 0.0
    %1160 = vmatpush2.msra.mxu0 0.0
    %1161 = vmatprep.subr.mxu0 0.0
    %1162 = vmatpush2.msra.mxu0 0.0
    %1163 = vmatprep.subr.mxu0 0.0
    %1164 = vmatpush2.msra.mxu0 0.0
    %1165 = vmatprep.subr.mxu0 0.0
    %1166 = vmatpush2.msra.mxu0 0.0
    %1167 = vmatprep.subr.mxu0 0.0
    %1168 = vmatpush2.msra.mxu0 0.0
    %1169 = vmatprep.subr.mxu0 0.0
    %1170 = vmatpush2.msra.mxu0 0.0
    %1171 = vmatprep.subr.mxu0 0.0
    %1172 = vmatpush2.msra.mxu0 0.0
    %1173 = vmatprep.subr.mxu0 0.0
    %1174 = vmatpush2.msra.mxu0 0.0
    %1175 = vmatprep.subr.mxu0 0.0
    %1176 = vmatpush2.msra.mxu0 0.0
    %1177 = vmatprep.subr.mxu0 0.0
    %1178 = vmatpush2.msra.mxu0 0.0
    %1179 = vmatprep.subr.mxu0 0.0
    %1180 = vmatpush2.msra.mxu0 0.0
    %1181 = vmatprep.mubr.f32.mxu0 0.0
    %1182 = vmatmul.mubr.f32.gmra.mxu0 %v1112
    %v1183 = vpop.f32.mrf.mxu0
    %v1184 = vadd.f32 %v1108, %v1183
    %v1185 = vpop.f32.mrf.mxu0
    %1186 = vdwg.mxu0
    %v1187 = vld [vmem:[%s11] sm:$0x1]
    %v1189 = vlaneseq
    %v1190 = vshrl.u32 %v1189, 7
    %v1191 = vsub.s32 0, %v1190
    %v1192 = vrot.slane %v1187, %v1191
    %v1194 = vadd.f32 %v1184, %v1192
    %v1195 = vmax.f32 %v1194, 0.0
    %v1196 = vld [vmem:[%s12] sm:$0xff]
    %v1197 = vld [vmem:[%s13] sm:$0x1]
    %v1199 = vlaneseq
    %v1200 = vshrl.u32 %v1199, 7
    %v1201 = vsub.s32 0, %v1200
    %v1202 = vrot.slane %v1197, %v1201
    %v1205 = vsel %vm526, %v1195, 0
    %1207 = vmatprep.subr.mxu0 0.0
    %1208 = vmatpush1.msra.mxu0 0.0
    %1209 = vmatprep.subr.mxu0 0.0
    %1210 = vmatpush1.msra.mxu0 0.0
    %1211 = vmatprep.subr.mxu0 0.0
    %1212 = vmatpush1.msra.mxu0 0.0
    %1213 = vmatprep.subr.mxu0 0.0
    %1214 = vmatpush1.msra.mxu0 0.0
    %1215 = vmatprep.subr.mxu0 0.0
    %1216 = vmatpush1.msra.mxu0 0.0
    %1217 = vmatprep.subr.mxu0 0.0
    %1218 = vmatpush1.msra.mxu0 0.0
    %1219 = vmatprep.subr.mxu0 0.0
    %1220 = vmatpush1.msra.mxu0 0.0
    %1221 = vmatprep.subr.mxu0 0.0
    %1222 = vmatpush1.msra.mxu0 0.0
    %1223 = vmatprep.subr.mxu0 0.0
    %1224 = vmatpush1.msra.mxu0 0.0
    %1225 = vmatprep.subr.mxu0 0.0
    %1226 = vmatpush1.msra.mxu0 0.0
    %1227 = vmatprep.subr.mxu0 0.0
    %1228 = vmatpush1.msra.mxu0 0.0
    %1229 = vmatprep.subr.mxu0 0.0
    %1230 = vmatpush1.msra.mxu0 0.0
    %1231 = vmatprep.subr.mxu0 0.0
    %1232 = vmatpush1.msra.mxu0 0.0
    %1233 = vmatprep.subr.mxu0 0.0
    %1234 = vmatpush1.msra.mxu0 0.0
    %1235 = vmatprep.subr.mxu0 0.0
    %1236 = vmatpush1.msra.mxu0 0.0
    %1237 = vmatprep.subr.mxu0 0.0
    %1238 = vmatpush1.msra.mxu0 %v1196
    %1239 = vmatprep.subr.mxu0 0.0
    %1240 = vmatpush2.msra.mxu0 0.0
    %1241 = vmatprep.subr.mxu0 0.0
    %1242 = vmatpush2.msra.mxu0 0.0
    %1243 = vmatprep.subr.mxu0 0.0
    %1244 = vmatpush2.msra.mxu0 0.0
    %1245 = vmatprep.subr.mxu0 0.0
    %1246 = vmatpush2.msra.mxu0 0.0
    %1247 = vmatprep.subr.mxu0 0.0
    %1248 = vmatpush2.msra.mxu0 0.0
    %1249 = vmatprep.subr.mxu0 0.0
    %1250 = vmatpush2.msra.mxu0 0.0
    %1251 = vmatprep.subr.mxu0 0.0
    %1252 = vmatpush2.msra.mxu0 0.0
    %1253 = vmatprep.subr.mxu0 0.0
    %1254 = vmatpush2.msra.mxu0 0.0
    %1255 = vmatprep.subr.mxu0 0.0
    %1256 = vmatpush2.msra.mxu0 0.0
    %1257 = vmatprep.subr.mxu0 0.0
    %1258 = vmatpush2.msra.mxu0 0.0
    %1259 = vmatprep.subr.mxu0 0.0
    %1260 = vmatpush2.msra.mxu0 0.0
    %1261 = vmatprep.subr.mxu0 0.0
    %1262 = vmatpush2.msra.mxu0 0.0
    %1263 = vmatprep.subr.mxu0 0.0
    %1264 = vmatpush2.msra.mxu0 0.0
    %1265 = vmatprep.subr.mxu0 0.0
    %1266 = vmatpush2.msra.mxu0 0.0
    %1267 = vmatprep.subr.mxu0 0.0
    %1268 = vmatpush2.msra.mxu0 0.0
    %1269 = vmatprep.subr.mxu0 0.0
    %1270 = vmatpush2.msra.mxu0 0.0
    %1271 = vmatprep.mubr.f32.mxu0 0.0
    %1272 = vmatmul.mubr.f32.gmra.mxu0 %v1205
    %v1273 = vpop.f32.mrf.mxu0
    %v1274 = vadd.f32 %v1202, %v1273
    %v1275 = vpop.f32.mrf.mxu0
    %1276 = vdwg.mxu0
    %1277 = vst.msk [vmem:[%s14] sm:$0xff] %vm198, %v1274
  $region65: #{tpu_custom_call.1} parent=0 // pred_fallthru
    _
  // Predicated region
  $region66: #{tpu_custom_call.1} parent=0 // pred_check
    _
  $region67: #{tpu_custom_call.1} parent=0 // pred_check_branch
    %1279 = sbr.rel (0) target = $region69
  $region68: #{tpu_custom_call.1} parent=0 // pred_region
    _
  $region69: #{tpu_custom_call.1} parent=0 // pred_fallthru
    _
  // Predicated region
  $region70: #{tpu_custom_call.1} parent=0 // pred_check
    _
  $region71: #{tpu_custom_call.1} parent=0 // pred_check_branch
    %1281 = sbr.rel (0) target = $region73
  $region72: #{tpu_custom_call.1} parent=0 // pred_region
    _
  $region73: #{tpu_custom_call.1} parent=0 // pred_fallthru
    _

</llo_original>
